<compile_context>
chip_gen: v7x
topology: tpu7x:2x2x1
jax: 0.10.0
libtpu: 0.0.40
codegen_flags: <defaults>
</compile_context>

<pallas_src>
from functools import partial

import jax
import jax.numpy as jnp
from jax import lax
from jax.experimental import pallas as pl
from jax.experimental.pallas import tpu as pltpu


def _fused_decoder_kernel(up_ref, xb_ref, w0_ref, b0_ref, w1_ref, w2_ref,
                          o_ref, pad_ref, col_ref, *, H, W, Cx, Cb, Cy):
    """One batch element per grid step; all intermediates stay in VMEM.

    up_ref : (1, Cx, Hp*Wp)  zero-padded, flattened upsampled x
    xb_ref : (1, Cb, Hp*Wp)  zero-padded, flattened x_big
    w0_ref : (Cy, 9*(Cx+Cb)) packed ConvTranspose weight (as a 'same' conv)
    b0_ref : (Cy, 1)         ConvTranspose bias
    w1/w2  : (Cy, 9*Cy)      packed conv weights
    o_ref  : (1, Cy, H*Wp)   lane-dense output (row stride Wp; wrapper strips
                             the 2 pad columns with a reshape+slice)
    pad_ref: (Cmax, Hp*Wp)   channel-major padded activations (VMEM)
    col_ref: (9*Cmax, L)     transposed im2col buffer (VMEM), L = H*Wp - 2
    """
    Wp, Hp = W + 2, H + 2
    L = H * Wp - 2                     # covers flat index (H-1)*Wp + (W-1)
    C0 = Cx + Cb
    Cmax = pad_ref.shape[0]

    # Valid-column mask over the flat output axis: position r = i*Wp + j is a
    # real pixel iff (r mod Wp) < W; the rest are wrap-around garbage that is
    # zeroed so it can serve as the halo columns of the next layer's input.
    col_idx = lax.broadcasted_iota(jnp.int32, (1, L), 1)
    valid = ((col_idx % Wp) < W).astype(jnp.float32)

    # Zero only the halo strips that the input copy below does not refresh
    # (only needed for channels beyond the concat width; dead code here).
    if Cmax > C0:
        pad_ref[C0:Cmax, 0:Wp + 1] = jnp.zeros((Cmax - C0, Wp + 1), jnp.float32)
        pad_ref[C0:Cmax, (H + 1) * Wp - 1:] = jnp.zeros((Cmax - C0, Wp + 1),
                                                        jnp.float32)

    # Fused torch.cat([up, x_big], 1): channel-stacked full-lane copies.  The
    # halo ring arrives already zeroed from the wrapper-side pad.
    pad_ref[0:Cx, :] = up_ref[0]
    pad_ref[Cx:C0, :] = xb_ref[0]

    def conv3x3(cin, w_ref, bias, relu, mask_halo):
        # Transposed im2col: 9 contiguous lane-shifted copies, full lane width.
        for t in range(9):
            kh, kw = divmod(t, 3)
            off = kh * Wp + kw
            col_ref[t * cin:(t + 1) * cin, :] = pad_ref[0:cin, off:off + L]
        acc = jnp.dot(w_ref[...], col_ref[0:9 * cin, :],
                      preferred_element_type=jnp.float32)          # (Cy, L)
        if bias is not None:
            acc = acc + bias                                       # (Cy,1) bcast
        if relu:
            acc = jnp.maximum(acc, 0.0)
        if mask_halo:
            acc = acc * valid
        return acc

    # Layer 0: ConvTranspose2d(k=3, s=1, p=1, bias=True)
    #          == 3x3 'same' conv with spatially flipped, (ci,co)-swapped kernel.
    a = conv3x3(C0, w0_ref, b0_ref[...], relu=False, mask_halo=True)
    pad_ref[0:Cy, Wp + 1:Wp + 1 + L] = a        # re-pad: one full-lane store

    # Layer 1: Conv2d(k=3, p=1, bias=False) + ReLU
    a = conv3x3(Cy, w1_ref, None, relu=True, mask_halo=True)
    pad_ref[0:Cy, Wp + 1:Wp + 1 + L] = a

    # Layer 2: Conv2d(k=3, p=1, bias=False) + ReLU -> lane-dense output store.
    a = conv3x3(Cy, w2_ref, None, relu=True, mask_halo=False)
    o_ref[0, :, 0:L] = a.astype(o_ref.dtype)
    o_ref[0, :, L:] = jnp.zeros((Cy, o_ref.shape[2] - L), o_ref.dtype)


def init_decoder_params(key, x_big_channels, x_channels, y_channels):
    """Deterministic synthetic parameters, stored in PyTorch layouts."""
    cin = x_big_channels + x_channels
    k0, k1, k2, k3 = jax.random.split(key, 4)
    return {
        # ConvTranspose2d weight layout: (in_channels, out_channels, KH, KW)
        "wt": 0.1 * jax.random.normal(k0, (cin, y_channels, 3, 3), jnp.float32),
        "bt": 0.1 * jax.random.normal(k1, (y_channels,), jnp.float32),
        # Conv2d weight layout: (out_channels, in_channels, KH, KW), bias=False
        "w1": 0.1 * jax.random.normal(k2, (y_channels, y_channels, 3, 3), jnp.float32),
        "w2": 0.1 * jax.random.normal(k3, (y_channels, y_channels, 3, 3), jnp.float32),
    }


def prepare_decoder_params(params):
    """One-time weight packing (hoisted out of the hot forward path).

    Each 3x3 kernel becomes a (Cout, 9*Cin) matmul LHS whose column order
    (tap-major kh*3+kw, then input channel) matches the kernel's transposed
    im2col row order.  The ConvTranspose2d weight is first converted to its
    equivalent 'same'-conv weight (spatial flip + in/out channel swap).
    """
    wt, bt, w1, w2 = params["wt"], params["bt"], params["w1"], params["w2"]
    cy = wt.shape[1]

    def pack(w_conv):  # (Cout, Cin, 3, 3) -> (Cout, 9*Cin), tap-major columns
        co, ci = w_conv.shape[0], w_conv.shape[1]
        return jnp.transpose(w_conv, (0, 2, 3, 1)).reshape(co, 9 * ci).astype(jnp.float32)

    w0_conv = jnp.transpose(jnp.flip(wt, axis=(2, 3)), (1, 0, 2, 3))  # (Cy,C0,3,3)
    return {"w0": pack(w0_conv),
            "b0": bt.reshape(cy, 1).astype(jnp.float32),
            "w1": pack(w1),
            "w2": pack(w2)}


@jax.jit
def decoder_forward(prepared, x_big_nchw, x_nchw):
    """Matches Decoder.forward: inputs/outputs are NCHW like PyTorch."""
    N, Cb, H, W = x_big_nchw.shape
    Cx = x_nchw.shape[1]
    Cy = prepared["b0"].shape[0]
    C0 = Cb + Cx
    Cmax = max(C0, Cy)
    Hp, Wp = H + 2, W + 2
    L = H * Wp - 2

    # F.upsample(..., mode='bilinear') -> half-pixel bilinear (align_corners=False).
    up = jax.image.resize(x_nchw, (N, Cx, H, W), method="bilinear")

    # Zero-pad the 1-pixel halo in XLA and flatten spatial dims so every
    # HBM block and every in-kernel copy is lane-dense/contiguous.
    up_p = jnp.pad(up, ((0, 0), (0, 0), (1, 1), (1, 1))).reshape(N, Cx, Hp * Wp)
    xb_p = jnp.pad(x_big_nchw, ((0, 0), (0, 0), (1, 1), (1, 1))).reshape(N, Cb, Hp * Wp)

    kernel = partial(_fused_decoder_kernel, H=H, W=W, Cx=Cx, Cb=Cb, Cy=Cy)

    y = pl.pallas_call(
        kernel,
        out_shape=jax.ShapeDtypeStruct((N, Cy, H * Wp), jnp.float32),
        grid=(N,),
        in_specs=[
            pl.BlockSpec((1, Cx, Hp * Wp), lambda n: (n, 0, 0)),   # upsampled x (padded)
            pl.BlockSpec((1, Cb, Hp * Wp), lambda n: (n, 0, 0)),   # x_big (padded)
            pl.BlockSpec((Cy, 9 * C0), lambda n: (0, 0)),          # packed w0
            pl.BlockSpec((Cy, 1), lambda n: (0, 0)),               # b0
            pl.BlockSpec((Cy, 9 * Cy), lambda n: (0, 0)),          # packed w1
            pl.BlockSpec((Cy, 9 * Cy), lambda n: (0, 0)),          # packed w2
        ],
        out_specs=pl.BlockSpec((1, Cy, H * Wp), lambda n: (n, 0, 0)),
        scratch_shapes=[
            pltpu.VMEM((Cmax, Hp * Wp), jnp.float32),              # padded acts
            pltpu.VMEM((9 * Cmax, L), jnp.float32),                # transposed im2col
        ],
        compiler_params=pltpu.CompilerParams(
            dimension_semantics=("parallel",),                     # feeds both v7x TCs for N>=2
            vmem_limit_bytes=64 * 1024 * 1024),
    )(up_p, xb_p, prepared["w0"], prepared["b0"], prepared["w1"], prepared["w2"])

    # (N, Cy, H*Wp) with row stride Wp -> strip the 2 pad columns -> NCHW.
    return y.reshape(N, Cy, H, Wp)[:, :, :, :W]


def _reference_forward(params, x_big, x):
    """Pure-JAX reference (NCHW), mirrors the PyTorch module."""
    N, Cb, H, W = x_big.shape
    Cx = x.shape[1]
    up = jax.image.resize(x, (N, Cx, H, W), method="bilinear")
    y = jnp.concatenate([up, x_big], axis=1)
    dn = ("NCHW", "OIHW", "NCHW")
    hi = lax.Precision.HIGHEST
    w0 = jnp.transpose(jnp.flip(params["wt"], (2, 3)), (1, 0, 2, 3))
    y = lax.conv_general_dilated(y, w0, (1, 1), "SAME",
                                 dimension_numbers=dn, precision=hi)
    y = y + params["bt"].reshape(1, -1, 1, 1)
    y = lax.conv_general_dilated(y, params["w1"], (1, 1), "SAME",
                                 dimension_numbers=dn, precision=hi)
    y = jnp.maximum(y, 0.0)
    y = lax.conv_general_dilated(y, params["w2"], (1, 1), "SAME",
                                 dimension_numbers=dn, precision=hi)
    return jnp.maximum(y, 0.0)


if __name__ == "__main__":
    key = jax.random.PRNGKey(0)
    k_big, k_small, k_params = jax.random.split(key, 3)

    # Small shapes: Decoder(x_big_channels=4, x_channels=8, y_channels=8)
    N, Cb, H, W = 2, 4, 16, 16
    Cx, h, w = 8, 8, 8
    Cy = 8

    x_big = jax.random.normal(k_big, (N, Cb, H, W), jnp.float32)
    x = jax.random.normal(k_small, (N, Cx, h, w), jnp.float32)

    params = init_decoder_params(k_params, Cb, Cx, Cy)
    prepared = prepare_decoder_params(params)          # one-time weight packing

    out = jax.block_until_ready(decoder_forward(prepared, x_big, x))
    assert out.shape == (N, Cy, H, W), out.shape
    assert bool(jnp.all(jnp.isfinite(out)))

    ref = jax.block_until_ready(_reference_forward(params, x_big, x))
    assert bool(jnp.allclose(out, ref, atol=1e-2, rtol=1e-2)), \
        float(jnp.max(jnp.abs(out - ref)))

    print("KERNEL_OK")
</pallas_src>

<mosaic_0001>
module attributes {stable_mosaic.version = 11 : i64} {
  func.func @_fused_decoder_kernel(%arg0: i32, %arg1: memref<1x8x324xf32, #tpu.memory_space<vmem>>, %arg2: memref<1x4x324xf32, #tpu.memory_space<vmem>>, %arg3: memref<8x108xf32, #tpu.memory_space<vmem>>, %arg4: memref<8x1xf32, #tpu.memory_space<vmem>>, %arg5: memref<8x72xf32, #tpu.memory_space<vmem>>, %arg6: memref<8x72xf32, #tpu.memory_space<vmem>>, %arg7: memref<1x8x288xf32, #tpu.memory_space<vmem>>, %arg8: memref<12x324xf32, #tpu.memory_space<vmem>>, %arg9: memref<108x286xf32, #tpu.memory_space<vmem>>) attributes {dimension_semantics = [#tpu.dimension_semantics<parallel>], iteration_bounds = array<i64: 2>, scalar_prefetch = 0 : i64, scratch_operands = 2 : i64, tpu.core_type = #tpu.core_type<tc>, window_params = [{transform_indices = @transform_0, window_bounds = array<i64: 1, 8, 324>}, {transform_indices = @transform_1, window_bounds = array<i64: 1, 4, 324>}, {pipeline_mode = #tpu.pipeline_mode<synchronous>, transform_indices = @transform_2, window_bounds = array<i64: 8, 108>}, {pipeline_mode = #tpu.pipeline_mode<synchronous>, transform_indices = @transform_3, window_bounds = array<i64: 8, 1>}, {pipeline_mode = #tpu.pipeline_mode<synchronous>, transform_indices = @transform_4, window_bounds = array<i64: 8, 72>}, {pipeline_mode = #tpu.pipeline_mode<synchronous>, transform_indices = @transform_5, window_bounds = array<i64: 8, 72>}, {transform_indices = @transform_6, window_bounds = array<i64: 1, 8, 288>}]} {
    %0 = tpu.iota {dimensions = array<i32: 1>} : vector<1x286xi32>
    %c18_i32 = arith.constant 18 : i32
    %c0_i32 = arith.constant 0 : i32
    %1 = arith.cmpi eq, %c18_i32, %c0_i32 : i32
    %c1_i32 = arith.constant 1 : i32
    %2 = arith.select %1, %c1_i32, %c18_i32 : i32
    %3 = vector.broadcast %2 : i32 to vector<1x286xi32>
    %4 = arith.remsi %0, %3 : vector<1x286xi32>
    %c0_i32_0 = arith.constant 0 : i32
    %5 = vector.broadcast %c0_i32_0 : i32 to vector<1x286xi32>
    %6 = arith.cmpi ne, %4, %5 : vector<1x286xi32>
    %c0_i32_1 = arith.constant 0 : i32
    %7 = vector.broadcast %c0_i32_1 : i32 to vector<1x286xi32>
    %8 = arith.cmpi slt, %4, %7 : vector<1x286xi32>
    %c0_i32_2 = arith.constant 0 : i32
    %9 = arith.cmpi slt, %2, %c0_i32_2 : i32
    %10 = vector.broadcast %9 : i1 to vector<1x286xi1>
    %11 = vector.broadcast %10 : vector<1x286xi1> to vector<1x286xi1>
    %12 = arith.xori %8, %11 : vector<1x286xi1>
    %13 = arith.andi %12, %6 : vector<1x286xi1>
    %14 = vector.broadcast %2 : i32 to vector<1x286xi32>
    %15 = arith.addi %4, %14 : vector<1x286xi32>
    %16 = arith.select %13, %15, %4 : vector<1x286xi1>, vector<1x286xi32>
    %c16_i32 = arith.constant 16 : i32
    %17 = vector.broadcast %c16_i32 : i32 to vector<1x286xi32>
    %18 = arith.cmpi slt, %16, %17 : vector<1x286xi32>
    %19 = arith.extui %18 : vector<1x286xi1> to vector<1x286xi32>
    %20 = arith.sitofp %19 : vector<1x286xi32> to vector<1x286xf32>
    %c0 = arith.constant 0 : index
    %c0_3 = arith.constant 0 : index
    %c0_4 = arith.constant 0 : index
    %21 = vector.load %arg1[%c0, %c0_3, %c0_4] : memref<1x8x324xf32, #tpu.memory_space<vmem>>, vector<1x8x324xf32>
    %22 = vector.shape_cast %21 : vector<1x8x324xf32> to vector<8x324xf32>
    %c0_5 = arith.constant 0 : index
    %c0_6 = arith.constant 0 : index
    %23 = vector.load %arg8[%c0_5, %c0_6] : memref<12x324xf32, #tpu.memory_space<vmem>>, vector<8x324xf32>
    tpu.vector_store %arg8[%c0_5, %c0_6], %22 {strides = array<i32>} : memref<12x324xf32, #tpu.memory_space<vmem>>, vector<8x324xf32>,
    %c0_7 = arith.constant 0 : index
    %c0_8 = arith.constant 0 : index
    %c0_9 = arith.constant 0 : index
    %24 = vector.load %arg2[%c0_7, %c0_8, %c0_9] : memref<1x4x324xf32, #tpu.memory_space<vmem>>, vector<1x4x324xf32>
    %25 = vector.shape_cast %24 : vector<1x4x324xf32> to vector<4x324xf32>
    %c8 = arith.constant 8 : index
    %c0_10 = arith.constant 0 : index
    %26 = vector.load %arg8[%c8, %c0_10] : memref<12x324xf32, #tpu.memory_space<vmem>>, vector<4x324xf32>
    tpu.vector_store %arg8[%c8, %c0_10], %25 {strides = array<i32>} : memref<12x324xf32, #tpu.memory_space<vmem>>, vector<4x324xf32>,
    %c0_11 = arith.constant 0 : index
    %c0_12 = arith.constant 0 : index
    %27 = vector.load %arg4[%c0_11, %c0_12] : memref<8x1xf32, #tpu.memory_space<vmem>>, vector<8x1xf32>
    %c0_13 = arith.constant 0 : index
    %c0_14 = arith.constant 0 : index
    %28 = vector.load %arg8[%c0_13, %c0_14] : memref<12x324xf32, #tpu.memory_space<vmem>>, vector<12x286xf32>
    %c0_15 = arith.constant 0 : index
    %c0_16 = arith.constant 0 : index
    %29 = vector.load %arg9[%c0_15, %c0_16] : memref<108x286xf32, #tpu.memory_space<vmem>>, vector<12x286xf32>
    tpu.vector_store %arg9[%c0_15, %c0_16], %28 {strides = array<i32>} : memref<108x286xf32, #tpu.memory_space<vmem>>, vector<12x286xf32>,
    %c0_17 = arith.constant 0 : index
    %c1 = arith.constant 1 : index
    %30 = vector.load %arg8[%c0_17, %c1] : memref<12x324xf32, #tpu.memory_space<vmem>>, vector<12x286xf32>
    %c12 = arith.constant 12 : index
    %c0_18 = arith.constant 0 : index
    %31 = vector.load %arg9[%c12, %c0_18] : memref<108x286xf32, #tpu.memory_space<vmem>>, vector<12x286xf32>
    tpu.vector_store %arg9[%c12, %c0_18], %30 {strides = array<i32>} : memref<108x286xf32, #tpu.memory_space<vmem>>, vector<12x286xf32>,
    %c0_19 = arith.constant 0 : index
    %c2 = arith.constant 2 : index
    %32 = vector.load %arg8[%c0_19, %c2] : memref<12x324xf32, #tpu.memory_space<vmem>>, vector<12x286xf32>
    %c24 = arith.constant 24 : index
    %c0_20 = arith.constant 0 : index
    %33 = vector.load %arg9[%c24, %c0_20] : memref<108x286xf32, #tpu.memory_space<vmem>>, vector<12x286xf32>
    tpu.vector_store %arg9[%c24, %c0_20], %32 {strides = array<i32>} : memref<108x286xf32, #tpu.memory_space<vmem>>, vector<12x286xf32>,
    %c0_21 = arith.constant 0 : index
    %c18 = arith.constant 18 : index
    %34 = vector.load %arg8[%c0_21, %c18] : memref<12x324xf32, #tpu.memory_space<vmem>>, vector<12x286xf32>
    %c36 = arith.constant 36 : index
    %c0_22 = arith.constant 0 : index
    %35 = vector.load %arg9[%c36, %c0_22] : memref<108x286xf32, #tpu.memory_space<vmem>>, vector<12x286xf32>
    tpu.vector_store %arg9[%c36, %c0_22], %34 {strides = array<i32>} : memref<108x286xf32, #tpu.memory_space<vmem>>, vector<12x286xf32>,
    %c0_23 = arith.constant 0 : index
    %c19 = arith.constant 19 : index
    %36 = vector.load %arg8[%c0_23, %c19] : memref<12x324xf32, #tpu.memory_space<vmem>>, vector<12x286xf32>
    %c48 = arith.constant 48 : index
    %c0_24 = arith.constant 0 : index
    %37 = vector.load %arg9[%c48, %c0_24] : memref<108x286xf32, #tpu.memory_space<vmem>>, vector<12x286xf32>
    tpu.vector_store %arg9[%c48, %c0_24], %36 {strides = array<i32>} : memref<108x286xf32, #tpu.memory_space<vmem>>, vector<12x286xf32>,
    %c0_25 = arith.constant 0 : index
    %c20 = arith.constant 20 : index
    %38 = vector.load %arg8[%c0_25, %c20] : memref<12x324xf32, #tpu.memory_space<vmem>>, vector<12x286xf32>
    %c60 = arith.constant 60 : index
    %c0_26 = arith.constant 0 : index
    %39 = vector.load %arg9[%c60, %c0_26] : memref<108x286xf32, #tpu.memory_space<vmem>>, vector<12x286xf32>
    tpu.vector_store %arg9[%c60, %c0_26], %38 {strides = array<i32>} : memref<108x286xf32, #tpu.memory_space<vmem>>, vector<12x286xf32>,
    %c0_27 = arith.constant 0 : index
    %c36_28 = arith.constant 36 : index
    %40 = vector.load %arg8[%c0_27, %c36_28] : memref<12x324xf32, #tpu.memory_space<vmem>>, vector<12x286xf32>
    %c72 = arith.constant 72 : index
    %c0_29 = arith.constant 0 : index
    %41 = vector.load %arg9[%c72, %c0_29] : memref<108x286xf32, #tpu.memory_space<vmem>>, vector<12x286xf32>
    tpu.vector_store %arg9[%c72, %c0_29], %40 {strides = array<i32>} : memref<108x286xf32, #tpu.memory_space<vmem>>, vector<12x286xf32>,
    %c0_30 = arith.constant 0 : index
    %c37 = arith.constant 37 : index
    %42 = vector.load %arg8[%c0_30, %c37] : memref<12x324xf32, #tpu.memory_space<vmem>>, vector<12x286xf32>
    %c84 = arith.constant 84 : index
    %c0_31 = arith.constant 0 : index
    %43 = vector.load %arg9[%c84, %c0_31] : memref<108x286xf32, #tpu.memory_space<vmem>>, vector<12x286xf32>
    tpu.vector_store %arg9[%c84, %c0_31], %42 {strides = array<i32>} : memref<108x286xf32, #tpu.memory_space<vmem>>, vector<12x286xf32>,
    %c0_32 = arith.constant 0 : index
    %c38 = arith.constant 38 : index
    %44 = vector.load %arg8[%c0_32, %c38] : memref<12x324xf32, #tpu.memory_space<vmem>>, vector<12x286xf32>
    %c96 = arith.constant 96 : index
    %c0_33 = arith.constant 0 : index
    %45 = vector.load %arg9[%c96, %c0_33] : memref<108x286xf32, #tpu.memory_space<vmem>>, vector<12x286xf32>
    tpu.vector_store %arg9[%c96, %c0_33], %44 {strides = array<i32>} : memref<108x286xf32, #tpu.memory_space<vmem>>, vector<12x286xf32>,
    %c0_34 = arith.constant 0 : index
    %c0_35 = arith.constant 0 : index
    %46 = vector.load %arg3[%c0_34, %c0_35] : memref<8x108xf32, #tpu.memory_space<vmem>>, vector<8x108xf32>
    %c0_36 = arith.constant 0 : index
    %c0_37 = arith.constant 0 : index
    %47 = vector.load %arg9[%c0_36, %c0_37] : memref<108x286xf32, #tpu.memory_space<vmem>>, vector<108x286xf32>
    %cst = arith.constant dense<0.000000e+00> : vector<8x286xf32>
    %48 = tpu.matmul %46, %47, %cst {dimension_numbers = #tpu.dot_dimension_numbers<[1], [0], [0], [1], [0, 0, 1, 1], [], []>} : vector<8x108xf32>, vector<108x286xf32>, vector<8x286xf32> -> vector<8x286xf32>
    %49 = vector.broadcast %27 : vector<8x1xf32> to vector<8x286xf32>
    %50 = arith.addf %48, %49 : vector<8x286xf32>
    %51 = vector.broadcast %20 : vector<1x286xf32> to vector<8x286xf32>
    %52 = arith.mulf %50, %51 : vector<8x286xf32>
    %c0_38 = arith.constant 0 : index
    %c19_39 = arith.constant 19 : index
    %53 = vector.load %arg8[%c0_38, %c19_39] : memref<12x324xf32, #tpu.memory_space<vmem>>, vector<8x286xf32>
    tpu.vector_store %arg8[%c0_38, %c19_39], %52 {strides = array<i32>} : memref<12x324xf32, #tpu.memory_space<vmem>>, vector<8x286xf32>,
    %c0_40 = arith.constant 0 : index
    %c0_41 = arith.constant 0 : index
    %54 = vector.load %arg8[%c0_40, %c0_41] : memref<12x324xf32, #tpu.memory_space<vmem>>, vector<8x286xf32>
    %c0_42 = arith.constant 0 : index
    %c0_43 = arith.constant 0 : index
    %55 = vector.load %arg9[%c0_42, %c0_43] : memref<108x286xf32, #tpu.memory_space<vmem>>, vector<8x286xf32>
    tpu.vector_store %arg9[%c0_42, %c0_43], %54 {strides = array<i32>} : memref<108x286xf32, #tpu.memory_space<vmem>>, vector<8x286xf32>,
    %c0_44 = arith.constant 0 : index
    %c1_45 = arith.constant 1 : index
    %56 = vector.load %arg8[%c0_44, %c1_45] : memref<12x324xf32, #tpu.memory_space<vmem>>, vector<8x286xf32>
    %c8_46 = arith.constant 8 : index
    %c0_47 = arith.constant 0 : index
    %57 = vector.load %arg9[%c8_46, %c0_47] : memref<108x286xf32, #tpu.memory_space<vmem>>, vector<8x286xf32>
    tpu.vector_store %arg9[%c8_46, %c0_47], %56 {strides = array<i32>} : memref<108x286xf32, #tpu.memory_space<vmem>>, vector<8x286xf32>,
    %c0_48 = arith.constant 0 : index
    %c2_49 = arith.constant 2 : index
    %58 = vector.load %arg8[%c0_48, %c2_49] : memref<12x324xf32, #tpu.memory_space<vmem>>, vector<8x286xf32>
    %c16 = arith.constant 16 : index
    %c0_50 = arith.constant 0 : index
    %59 = vector.load %arg9[%c16, %c0_50] : memref<108x286xf32, #tpu.memory_space<vmem>>, vector<8x286xf32>
    tpu.vector_store %arg9[%c16, %c0_50], %58 {strides = array<i32>} : memref<108x286xf32, #tpu.memory_space<vmem>>, vector<8x286xf32>,
    %c0_51 = arith.constant 0 : index
    %c18_52 = arith.constant 18 : index
    %60 = vector.load %arg8[%c0_51, %c18_52] : memref<12x324xf32, #tpu.memory_space<vmem>>, vector<8x286xf32>
    %c24_53 = arith.constant 24 : index
    %c0_54 = arith.constant 0 : index
    %61 = vector.load %arg9[%c24_53, %c0_54] : memref<108x286xf32, #tpu.memory_space<vmem>>, vector<8x286xf32>
    tpu.vector_store %arg9[%c24_53, %c0_54], %60 {strides = array<i32>} : memref<108x286xf32, #tpu.memory_space<vmem>>, vector<8x286xf32>,
    %c0_55 = arith.constant 0 : index
    %c19_56 = arith.constant 19 : index
    %62 = vector.load %arg8[%c0_55, %c19_56] : memref<12x324xf32, #tpu.memory_space<vmem>>, vector<8x286xf32>
    %c32 = arith.constant 32 : index
    %c0_57 = arith.constant 0 : index
    %63 = vector.load %arg9[%c32, %c0_57] : memref<108x286xf32, #tpu.memory_space<vmem>>, vector<8x286xf32>
    tpu.vector_store %arg9[%c32, %c0_57], %62 {strides = array<i32>} : memref<108x286xf32, #tpu.memory_space<vmem>>, vector<8x286xf32>,
    %c0_58 = arith.constant 0 : index
    %c20_59 = arith.constant 20 : index
    %64 = vector.load %arg8[%c0_58, %c20_59] : memref<12x324xf32, #tpu.memory_space<vmem>>, vector<8x286xf32>
    %c40 = arith.constant 40 : index
    %c0_60 = arith.constant 0 : index
    %65 = vector.load %arg9[%c40, %c0_60] : memref<108x286xf32, #tpu.memory_space<vmem>>, vector<8x286xf32>
    tpu.vector_store %arg9[%c40, %c0_60], %64 {strides = array<i32>} : memref<108x286xf32, #tpu.memory_space<vmem>>, vector<8x286xf32>,
    %c0_61 = arith.constant 0 : index
    %c36_62 = arith.constant 36 : index
    %66 = vector.load %arg8[%c0_61, %c36_62] : memref<12x324xf32, #tpu.memory_space<vmem>>, vector<8x286xf32>
    %c48_63 = arith.constant 48 : index
    %c0_64 = arith.constant 0 : index
    %67 = vector.load %arg9[%c48_63, %c0_64] : memref<108x286xf32, #tpu.memory_space<vmem>>, vector<8x286xf32>
    tpu.vector_store %arg9[%c48_63, %c0_64], %66 {strides = array<i32>} : memref<108x286xf32, #tpu.memory_space<vmem>>, vector<8x286xf32>,
    %c0_65 = arith.constant 0 : index
    %c37_66 = arith.constant 37 : index
    %68 = vector.load %arg8[%c0_65, %c37_66] : memref<12x324xf32, #tpu.memory_space<vmem>>, vector<8x286xf32>
    %c56 = arith.constant 56 : index
    %c0_67 = arith.constant 0 : index
    %69 = vector.load %arg9[%c56, %c0_67] : memref<108x286xf32, #tpu.memory_space<vmem>>, vector<8x286xf32>
    tpu.vector_store %arg9[%c56, %c0_67], %68 {strides = array<i32>} : memref<108x286xf32, #tpu.memory_space<vmem>>, vector<8x286xf32>,
    %c0_68 = arith.constant 0 : index
    %c38_69 = arith.constant 38 : index
    %70 = vector.load %arg8[%c0_68, %c38_69] : memref<12x324xf32, #tpu.memory_space<vmem>>, vector<8x286xf32>
    %c64 = arith.constant 64 : index
    %c0_70 = arith.constant 0 : index
    %71 = vector.load %arg9[%c64, %c0_70] : memref<108x286xf32, #tpu.memory_space<vmem>>, vector<8x286xf32>
    tpu.vector_store %arg9[%c64, %c0_70], %70 {strides = array<i32>} : memref<108x286xf32, #tpu.memory_space<vmem>>, vector<8x286xf32>,
    %c0_71 = arith.constant 0 : index
    %c0_72 = arith.constant 0 : index
    %72 = vector.load %arg5[%c0_71, %c0_72] : memref<8x72xf32, #tpu.memory_space<vmem>>, vector<8x72xf32>
    %c0_73 = arith.constant 0 : index
    %c0_74 = arith.constant 0 : index
    %73 = vector.load %arg9[%c0_73, %c0_74] : memref<108x286xf32, #tpu.memory_space<vmem>>, vector<72x286xf32>
    %cst_75 = arith.constant dense<0.000000e+00> : vector<8x286xf32>
    %74 = tpu.matmul %72, %73, %cst_75 {dimension_numbers = #tpu.dot_dimension_numbers<[1], [0], [0], [1], [0, 0, 1, 1], [], []>} : vector<8x72xf32>, vector<72x286xf32>, vector<8x286xf32> -> vector<8x286xf32>
    %cst_76 = arith.constant 0.000000e+00 : f32
    %75 = vector.broadcast %cst_76 : f32 to vector<8x286xf32>
    %76 = arith.maximumf %74, %75 : vector<8x286xf32>
    %77 = vector.broadcast %20 : vector<1x286xf32> to vector<8x286xf32>
    %78 = arith.mulf %76, %77 : vector<8x286xf32>
    %c0_77 = arith.constant 0 : index
    %c19_78 = arith.constant 19 : index
    %79 = vector.load %arg8[%c0_77, %c19_78] : memref<12x324xf32, #tpu.memory_space<vmem>>, vector<8x286xf32>
    tpu.vector_store %arg8[%c0_77, %c19_78], %78 {strides = array<i32>} : memref<12x324xf32, #tpu.memory_space<vmem>>, vector<8x286xf32>,
    %c0_79 = arith.constant 0 : index
    %c0_80 = arith.constant 0 : index
    %80 = vector.load %arg8[%c0_79, %c0_80] : memref<12x324xf32, #tpu.memory_space<vmem>>, vector<8x286xf32>
    %c0_81 = arith.constant 0 : index
    %c0_82 = arith.constant 0 : index
    %81 = vector.load %arg9[%c0_81, %c0_82] : memref<108x286xf32, #tpu.memory_space<vmem>>, vector<8x286xf32>
    tpu.vector_store %arg9[%c0_81, %c0_82], %80 {strides = array<i32>} : memref<108x286xf32, #tpu.memory_space<vmem>>, vector<8x286xf32>,
    %c0_83 = arith.constant 0 : index
    %c1_84 = arith.constant 1 : index
    %82 = vector.load %arg8[%c0_83, %c1_84] : memref<12x324xf32, #tpu.memory_space<vmem>>, vector<8x286xf32>
    %c8_85 = arith.constant 8 : index
    %c0_86 = arith.constant 0 : index
    %83 = vector.load %arg9[%c8_85, %c0_86] : memref<108x286xf32, #tpu.memory_space<vmem>>, vector<8x286xf32>
    tpu.vector_store %arg9[%c8_85, %c0_86], %82 {strides = array<i32>} : memref<108x286xf32, #tpu.memory_space<vmem>>, vector<8x286xf32>,
    %c0_87 = arith.constant 0 : index
    %c2_88 = arith.constant 2 : index
    %84 = vector.load %arg8[%c0_87, %c2_88] : memref<12x324xf32, #tpu.memory_space<vmem>>, vector<8x286xf32>
    %c16_89 = arith.constant 16 : index
    %c0_90 = arith.constant 0 : index
    %85 = vector.load %arg9[%c16_89, %c0_90] : memref<108x286xf32, #tpu.memory_space<vmem>>, vector<8x286xf32>
    tpu.vector_store %arg9[%c16_89, %c0_90], %84 {strides = array<i32>} : memref<108x286xf32, #tpu.memory_space<vmem>>, vector<8x286xf32>,
    %c0_91 = arith.constant 0 : index
    %c18_92 = arith.constant 18 : index
    %86 = vector.load %arg8[%c0_91, %c18_92] : memref<12x324xf32, #tpu.memory_space<vmem>>, vector<8x286xf32>
    %c24_93 = arith.constant 24 : index
    %c0_94 = arith.constant 0 : index
    %87 = vector.load %arg9[%c24_93, %c0_94] : memref<108x286xf32, #tpu.memory_space<vmem>>, vector<8x286xf32>
    tpu.vector_store %arg9[%c24_93, %c0_94], %86 {strides = array<i32>} : memref<108x286xf32, #tpu.memory_space<vmem>>, vector<8x286xf32>,
    %c0_95 = arith.constant 0 : index
    %c19_96 = arith.constant 19 : index
    %88 = vector.load %arg8[%c0_95, %c19_96] : memref<12x324xf32, #tpu.memory_space<vmem>>, vector<8x286xf32>
    %c32_97 = arith.constant 32 : index
    %c0_98 = arith.constant 0 : index
    %89 = vector.load %arg9[%c32_97, %c0_98] : memref<108x286xf32, #tpu.memory_space<vmem>>, vector<8x286xf32>
    tpu.vector_store %arg9[%c32_97, %c0_98], %88 {strides = array<i32>} : memref<108x286xf32, #tpu.memory_space<vmem>>, vector<8x286xf32>,
    %c0_99 = arith.constant 0 : index
    %c20_100 = arith.constant 20 : index
    %90 = vector.load %arg8[%c0_99, %c20_100] : memref<12x324xf32, #tpu.memory_space<vmem>>, vector<8x286xf32>
    %c40_101 = arith.constant 40 : index
    %c0_102 = arith.constant 0 : index
    %91 = vector.load %arg9[%c40_101, %c0_102] : memref<108x286xf32, #tpu.memory_space<vmem>>, vector<8x286xf32>
    tpu.vector_store %arg9[%c40_101, %c0_102], %90 {strides = array<i32>} : memref<108x286xf32, #tpu.memory_space<vmem>>, vector<8x286xf32>,
    %c0_103 = arith.constant 0 : index
    %c36_104 = arith.constant 36 : index
    %92 = vector.load %arg8[%c0_103, %c36_104] : memref<12x324xf32, #tpu.memory_space<vmem>>, vector<8x286xf32>
    %c48_105 = arith.constant 48 : index
    %c0_106 = arith.constant 0 : index
    %93 = vector.load %arg9[%c48_105, %c0_106] : memref<108x286xf32, #tpu.memory_space<vmem>>, vector<8x286xf32>
    tpu.vector_store %arg9[%c48_105, %c0_106], %92 {strides = array<i32>} : memref<108x286xf32, #tpu.memory_space<vmem>>, vector<8x286xf32>,
    %c0_107 = arith.constant 0 : index
    %c37_108 = arith.constant 37 : index
    %94 = vector.load %arg8[%c0_107, %c37_108] : memref<12x324xf32, #tpu.memory_space<vmem>>, vector<8x286xf32>
    %c56_109 = arith.constant 56 : index
    %c0_110 = arith.constant 0 : index
    %95 = vector.load %arg9[%c56_109, %c0_110] : memref<108x286xf32, #tpu.memory_space<vmem>>, vector<8x286xf32>
    tpu.vector_store %arg9[%c56_109, %c0_110], %94 {strides = array<i32>} : memref<108x286xf32, #tpu.memory_space<vmem>>, vector<8x286xf32>,
    %c0_111 = arith.constant 0 : index
    %c38_112 = arith.constant 38 : index
    %96 = vector.load %arg8[%c0_111, %c38_112] : memref<12x324xf32, #tpu.memory_space<vmem>>, vector<8x286xf32>
    %c64_113 = arith.constant 64 : index
    %c0_114 = arith.constant 0 : index
    %97 = vector.load %arg9[%c64_113, %c0_114] : memref<108x286xf32, #tpu.memory_space<vmem>>, vector<8x286xf32>
    tpu.vector_store %arg9[%c64_113, %c0_114], %96 {strides = array<i32>} : memref<108x286xf32, #tpu.memory_space<vmem>>, vector<8x286xf32>,
    %c0_115 = arith.constant 0 : index
    %c0_116 = arith.constant 0 : index
    %98 = vector.load %arg6[%c0_115, %c0_116] : memref<8x72xf32, #tpu.memory_space<vmem>>, vector<8x72xf32>
    %c0_117 = arith.constant 0 : index
    %c0_118 = arith.constant 0 : index
    %99 = vector.load %arg9[%c0_117, %c0_118] : memref<108x286xf32, #tpu.memory_space<vmem>>, vector<72x286xf32>
    %cst_119 = arith.constant dense<0.000000e+00> : vector<8x286xf32>
    %100 = tpu.matmul %98, %99, %cst_119 {dimension_numbers = #tpu.dot_dimension_numbers<[1], [0], [0], [1], [0, 0, 1, 1], [], []>} : vector<8x72xf32>, vector<72x286xf32>, vector<8x286xf32> -> vector<8x286xf32>
    %cst_120 = arith.constant 0.000000e+00 : f32
    %101 = vector.broadcast %cst_120 : f32 to vector<8x286xf32>
    %102 = arith.maximumf %100, %101 : vector<8x286xf32>
    %c0_121 = arith.constant 0 : index
    %c0_122 = arith.constant 0 : index
    %c0_123 = arith.constant 0 : index
    %103 = vector.load %arg7[%c0_121, %c0_122, %c0_123] : memref<1x8x288xf32, #tpu.memory_space<vmem>>, vector<1x8x286xf32>
    %104 = vector.shape_cast %103 : vector<1x8x286xf32> to vector<8x286xf32>
    %105 = vector.shape_cast %102 : vector<8x286xf32> to vector<1x8x286xf32>
    tpu.vector_store %arg7[%c0_121, %c0_122, %c0_123], %105 {strides = array<i32>} : memref<1x8x288xf32, #tpu.memory_space<vmem>>, vector<1x8x286xf32>,
    %cst_124 = arith.constant 0.000000e+00 : f32
    %106 = vector.broadcast %cst_124 : f32 to vector<8x2xf32>
    %c0_125 = arith.constant 0 : index
    %c0_126 = arith.constant 0 : index
    %c286 = arith.constant 286 : index
    %107 = vector.load %arg7[%c0_125, %c0_126, %c286] : memref<1x8x288xf32, #tpu.memory_space<vmem>>, vector<1x8x2xf32>
    %108 = vector.shape_cast %107 : vector<1x8x2xf32> to vector<8x2xf32>
    %109 = vector.shape_cast %106 : vector<8x2xf32> to vector<1x8x2xf32>
    tpu.vector_store %arg7[%c0_125, %c0_126, %c286], %109 {strides = array<i32>} : memref<1x8x288xf32, #tpu.memory_space<vmem>>, vector<1x8x2xf32>,
    return
  }
  func.func @transform_0(%arg0: i32) -> (i32, i32, i32) {
    %c0_i32 = arith.constant 0 : i32
    %c0_i32_0 = arith.constant 0 : i32
    %c0_i32_1 = arith.constant 0 : i32
    return %arg0, %c0_i32, %c0_i32_0 : i32, i32, i32
  }
  func.func @transform_1(%arg0: i32) -> (i32, i32, i32) {
    %c0_i32 = arith.constant 0 : i32
    %c0_i32_0 = arith.constant 0 : i32
    %c0_i32_1 = arith.constant 0 : i32
    return %arg0, %c0_i32, %c0_i32_0 : i32, i32, i32
  }
  func.func @transform_2(%arg0: i32) -> (i32, i32) {
    %c0_i32 = arith.constant 0 : i32
    %c0_i32_0 = arith.constant 0 : i32
    %c0_i32_1 = arith.constant 0 : i32
    return %c0_i32, %c0_i32_0 : i32, i32
  }
  func.func @transform_3(%arg0: i32) -> (i32, i32) {
    %c0_i32 = arith.constant 0 : i32
    %c0_i32_0 = arith.constant 0 : i32
    %c0_i32_1 = arith.constant 0 : i32
    return %c0_i32, %c0_i32_0 : i32, i32
  }
  func.func @transform_4(%arg0: i32) -> (i32, i32) {
    %c0_i32 = arith.constant 0 : i32
    %c0_i32_0 = arith.constant 0 : i32
    %c0_i32_1 = arith.constant 0 : i32
    return %c0_i32, %c0_i32_0 : i32, i32
  }
  func.func @transform_5(%arg0: i32) -> (i32, i32) {
    %c0_i32 = arith.constant 0 : i32
    %c0_i32_0 = arith.constant 0 : i32
    %c0_i32_1 = arith.constant 0 : i32
    return %c0_i32, %c0_i32_0 : i32, i32
  }
  func.func @transform_6(%arg0: i32) -> (i32, i32, i32) {
    %c0_i32 = arith.constant 0 : i32
    %c0_i32_0 = arith.constant 0 : i32
    %c0_i32_1 = arith.constant 0 : i32
    return %arg0, %c0_i32, %c0_i32_0 : i32, i32, i32
  }
}

</mosaic_0001>

<llo_original>
// kernel: decoder_forward.1
$region0: #{decoder_forward.1}
  #allocation0 [shape = 'u32[]', space=smem, size = 0x4, offset = 0x4, fixed_abs, tag = 'smem constant byte address 0x4 - core index']
  #allocation1 [shape = 'u32[144,128]{1,0:T(1,128)}', space=vmem, size = 0x12000, scoped, tag = 'internal scratch']
  #allocation2 [shape = 'f32[12,324]{1,0:T(8,128)}', space=vmem, size = 0x6000, scoped, tag = 'scratch operand']
  #allocation3 [shape = 'f32[108,286]{1,0:T(8,128)}', space=vmem, size = 0x2a000, scoped, tag = 'scratch operand']
  %s0 = inlined_call_operand.hbm [shape: f32[2,8,324], index: 0, kind: input, shape index: {}]
  %s1 = inlined_call_operand.hbm [shape: f32[2,4,324], index: 1, kind: input, shape index: {}]
  %s2 = inlined_call_operand.hbm [shape: f32[8,108], index: 2, kind: input, shape index: {}]
  %s3 = inlined_call_operand.hbm [shape: f32[8,1], index: 3, kind: input, shape index: {}]
  %s4 = inlined_call_operand.hbm [shape: f32[8,72], index: 4, kind: input, shape index: {}]
  %s5 = inlined_call_operand.hbm [shape: f32[8,72], index: 5, kind: input, shape index: {}]
  %s6 = inlined_call_operand.hbm [shape: f32[2,8,288], index: 6, kind: output, shape index: {}]
  %s7 = sld [smem:[#allocation0]]
  $region81: #{decoder_forward.1} parent=0
    _
  %s9 = ssub.s32 1, %s7
  %s10 = scalar_select 0, %s9, %s7
  $region1: #{decoder_forward.1} parent=0
    #allocation4 [shape = 'u8[24576]{0}', space=vmem, size = 0x6000, scoped, tag = 'input window, operand 0']
    #allocation5 [shape = 's32[2]{0}', space=sflag, size = 0x8, scoped, tag = 'scoped memory for decoder_forward.1']
    #allocation6 [shape = 's32[2]{0}', space=sflag, size = 0x8, scoped, tag = 'scoped memory for decoder_forward.1']
    #allocation7 [shape = 'u8[12288]{0}', space=vmem, size = 0x3000, scoped, tag = 'input window, operand 1']
    #allocation8 [shape = 's32[2]{0}', space=sflag, size = 0x8, scoped, tag = 'scoped memory for decoder_forward.1']
    #allocation9 [shape = 'u8[4096]{0}', space=vmem, size = 0x1000, scoped, tag = 'input window, operand 2, single buffered']
    #allocation10 [shape = 'u8[4096]{0}', space=vmem, size = 0x1000, scoped, tag = 'input window, operand 3, single buffered']
    #allocation11 [shape = 's32[1]{0}', space=sflag, size = 0x4, scoped, tag = 'scoped memory for decoder_forward.1']
    #allocation12 [shape = 'u8[4096]{0}', space=vmem, size = 0x1000, scoped, tag = 'input window, operand 4, single buffered']
    #allocation13 [shape = 'u8[4096]{0}', space=vmem, size = 0x1000, scoped, tag = 'input window, operand 5, single buffered']
    #allocation14 [shape = 's32[1]{0}', space=sflag, size = 0x4, scoped, tag = 'scoped memory for decoder_forward.1']
    #allocation15 [shape = 'u8[24576]{0}', space=vmem, size = 0x6000, scoped, tag = 'output window, operand 0']
    %11 = vsyncpa [#allocation5], 0
    %s12 = scalar_lea.sflag [#allocation5], 1
    %13 = vsyncpa %s12, 0
    %14 = vsyncpa [#allocation8], 0
    %s15 = scalar_lea.sflag [#allocation8], 1
    %16 = vsyncpa %s15, 0
    %17 = vsyncpa [#allocation11], 0
    %18 = vsyncpa [#allocation14], 0
    %19 = vsyncpa [#allocation6], 0
    %s20 = scalar_lea.sflag [#allocation6], 1
    %21 = vsyncpa %s20, 0
    loop: start=0, step=1, limit=4
    $region2: #{decoder_forward.1} parent=1 // loop_pre_header
      _
    $region3: #{decoder_forward.1} parent=1 // loop_header
      %s23 = sphi 0, %s27
      %p24 = scmp.ge.s32.totalorder %s23, 4
      %s33 = sphi 0, %s35
      %s36 = sphi 0, %s33
      %s37 = sphi 0, %s36
      %s53 = sphi 0, %s37
      %s59 = sphi 0, %s61
      %s62 = sphi 0, %s59
      %s63 = sphi 0, %s62
      %s79 = sphi 0, %s63
      %s83 = sphi 0, %s83
      %s85 = sphi 0, %s83
      %s86 = sphi 0, %s85
      %s100 = sphi 0, %s86
      %s104 = sphi 0, %s104
      %s106 = sphi 0, %s104
      %s107 = sphi 0, %s106
      %s121 = sphi 0, %s107
      %s125 = sphi 0, %s125
      %s127 = sphi 0, %s125
      %s128 = sphi 0, %s127
      %s142 = sphi 0, %s128
      %s146 = sphi 0, %s146
      %s148 = sphi 0, %s146
      %s149 = sphi 0, %s148
      %s163 = sphi 0, %s149
      %s169 = sphi 0, %s171
      %s172 = sphi 0, %s169
      %s173 = sphi 0, %s172
      %s189 = sphi 0, %s173
    $region4: #{decoder_forward.1} parent=1 // loop_header_branch
      %26 = sbr.rel (%p24) target = $region8
    $region5: #{decoder_forward.1} parent=1 // loop_body
      %s28 = ssub.s32 %s23, 1
      %s29 = ssub.s32 %s23, 2
      %s30 = sadd.s32 %s23, 1
      %s31 = ssub.s32 %s23, %s30
      %p32 = scmp.eq.s32.totalorder %s31, 0
      %s34 = sadd.s32 %s33, 1
      %s35 = scalar_select %p32, %s33, %s34
      %p38 = pneg %p32
      %p39 = scmp.eq.s32.totalorder %s23, 1
      %p40 = por %p38, %p39
      %p41 = scmp.ne.s32.totalorder %s33, %s36
      %p42 = scmp.eq.s32.totalorder %s23, 0
      %p43 = por %p41, %p42
      %p44 = scmp.ne.s32.totalorder %s33, %s36
      %p45 = scmp.eq.s32.totalorder %s28, 1
      %p46 = por %p44, %p45
      %p47 = scmp.ne.s32.totalorder %s36, %s37
      %p48 = scmp.eq.s32.totalorder %s28, 0
      %p49 = por %p47, %p48
      %p50 = scmp.ne.s32.totalorder %s36, %s37
      %p51 = scmp.eq.s32.totalorder %s29, 1
      %p52 = por %p50, %p51
      %p54 = scmp.ne.s32.totalorder %s37, %s53
      %p55 = scmp.eq.s32.totalorder %s29, 0
      %p56 = por %p54, %p55
      %s57 = ssub.s32 %s23, %s30
      %p58 = scmp.eq.s32.totalorder %s57, 0
      %s60 = sadd.s32 %s59, 1
      %s61 = scalar_select %p58, %s59, %s60
      %p64 = pneg %p58
      %p65 = scmp.eq.s32.totalorder %s23, 1
      %p66 = por %p64, %p65
      %p67 = scmp.ne.s32.totalorder %s59, %s62
      %p68 = scmp.eq.s32.totalorder %s23, 0
      %p69 = por %p67, %p68
      %p70 = scmp.ne.s32.totalorder %s59, %s62
      %p71 = scmp.eq.s32.totalorder %s28, 1
      %p72 = por %p70, %p71
      %p73 = scmp.ne.s32.totalorder %s62, %s63
      %p74 = scmp.eq.s32.totalorder %s28, 0
      %p75 = por %p73, %p74
      %p76 = scmp.ne.s32.totalorder %s62, %s63
      %p77 = scmp.eq.s32.totalorder %s29, 1
      %p78 = por %p76, %p77
      %p80 = scmp.ne.s32.totalorder %s63, %s79
      %p81 = scmp.eq.s32.totalorder %s29, 0
      %p82 = por %p80, %p81
      %s84 = sadd.s32 %s83, 1
      %p87 = scmp.eq.s32.totalorder %s23, 1
      %p88 = scmp.ne.s32.totalorder %s83, %s85
      %p89 = scmp.eq.s32.totalorder %s23, 0
      %p90 = por %p88, %p89
      %p91 = scmp.ne.s32.totalorder %s83, %s85
      %p92 = scmp.eq.s32.totalorder %s28, 1
      %p93 = por %p91, %p92
      %p94 = scmp.ne.s32.totalorder %s85, %s86
      %p95 = scmp.eq.s32.totalorder %s28, 0
      %p96 = por %p94, %p95
      %p97 = scmp.ne.s32.totalorder %s85, %s86
      %p98 = scmp.eq.s32.totalorder %s29, 1
      %p99 = por %p97, %p98
      %p101 = scmp.ne.s32.totalorder %s86, %s100
      %p102 = scmp.eq.s32.totalorder %s29, 0
      %p103 = por %p101, %p102
      %s105 = sadd.s32 %s104, 1
      %p108 = scmp.eq.s32.totalorder %s23, 1
      %p109 = scmp.ne.s32.totalorder %s104, %s106
      %p110 = scmp.eq.s32.totalorder %s23, 0
      %p111 = por %p109, %p110
      %p112 = scmp.ne.s32.totalorder %s104, %s106
      %p113 = scmp.eq.s32.totalorder %s28, 1
      %p114 = por %p112, %p113
      %p115 = scmp.ne.s32.totalorder %s106, %s107
      %p116 = scmp.eq.s32.totalorder %s28, 0
      %p117 = por %p115, %p116
      %p118 = scmp.ne.s32.totalorder %s106, %s107
      %p119 = scmp.eq.s32.totalorder %s29, 1
      %p120 = por %p118, %p119
      %p122 = scmp.ne.s32.totalorder %s107, %s121
      %p123 = scmp.eq.s32.totalorder %s29, 0
      %p124 = por %p122, %p123
      %s126 = sadd.s32 %s125, 1
      %p129 = scmp.eq.s32.totalorder %s23, 1
      %p130 = scmp.ne.s32.totalorder %s125, %s127
      %p131 = scmp.eq.s32.totalorder %s23, 0
      %p132 = por %p130, %p131
      %p133 = scmp.ne.s32.totalorder %s125, %s127
      %p134 = scmp.eq.s32.totalorder %s28, 1
      %p135 = por %p133, %p134
      %p136 = scmp.ne.s32.totalorder %s127, %s128
      %p137 = scmp.eq.s32.totalorder %s28, 0
      %p138 = por %p136, %p137
      %p139 = scmp.ne.s32.totalorder %s127, %s128
      %p140 = scmp.eq.s32.totalorder %s29, 1
      %p141 = por %p139, %p140
      %p143 = scmp.ne.s32.totalorder %s128, %s142
      %p144 = scmp.eq.s32.totalorder %s29, 0
      %p145 = por %p143, %p144
      %s147 = sadd.s32 %s146, 1
      %p150 = scmp.eq.s32.totalorder %s23, 1
      %p151 = scmp.ne.s32.totalorder %s146, %s148
      %p152 = scmp.eq.s32.totalorder %s23, 0
      %p153 = por %p151, %p152
      %p154 = scmp.ne.s32.totalorder %s146, %s148
      %p155 = scmp.eq.s32.totalorder %s28, 1
      %p156 = por %p154, %p155
      %p157 = scmp.ne.s32.totalorder %s148, %s149
      %p158 = scmp.eq.s32.totalorder %s28, 0
      %p159 = por %p157, %p158
      %p160 = scmp.ne.s32.totalorder %s148, %s149
      %p161 = scmp.eq.s32.totalorder %s29, 1
      %p162 = por %p160, %p161
      %p164 = scmp.ne.s32.totalorder %s149, %s163
      %p165 = scmp.eq.s32.totalorder %s29, 0
      %p166 = por %p164, %p165
      %s167 = ssub.s32 %s23, %s30
      %p168 = scmp.eq.s32.totalorder %s167, 0
      %s170 = sadd.s32 %s169, 1
      %s171 = scalar_select %p168, %s169, %s170
      %p174 = pneg %p168
      %p175 = scmp.eq.s32.totalorder %s23, 1
      %p176 = por %p174, %p175
      %p177 = scmp.ne.s32.totalorder %s169, %s172
      %p178 = scmp.eq.s32.totalorder %s23, 0
      %p179 = por %p177, %p178
      %p180 = scmp.ne.s32.totalorder %s169, %s172
      %p181 = scmp.eq.s32.totalorder %s28, 1
      %p182 = por %p180, %p181
      %p183 = scmp.ne.s32.totalorder %s172, %s173
      %p184 = scmp.eq.s32.totalorder %s28, 0
      %p185 = por %p183, %p184
      %p186 = scmp.ne.s32.totalorder %s172, %s173
      %p187 = scmp.eq.s32.totalorder %s29, 1
      %p188 = por %p186, %p187
      %p190 = scmp.ne.s32.totalorder %s173, %s189
      %p191 = scmp.eq.s32.totalorder %s29, 0
      %p192 = por %p190, %p191
      %p193 = scmp.le.s32.totalorder 1, %s23
      %p194 = scmp.lt.s32.totalorder %s23, 3
      %p195 = pnand %p193, %p194
      %p196 = pneg %p195
      // Predicated region
      $region9: #{decoder_forward.1} parent=5 // pred_check
        _
      $region10: #{decoder_forward.1} parent=5 // pred_check_branch
        %198 = sbr.rel (%p195) target = $region12
      $region11: #{decoder_forward.1} parent=5 // pred_region
        %s199 = ssub.s32 %s23, 1
        // Predicated region
        $region13: #{decoder_forward.1} parent=11 // pred_check
          %p200 = pneg %p96
        $region14: #{decoder_forward.1} parent=11 // pred_check_branch
          %202 = sbr.rel (%p200) target = $region16
        $region15: #{decoder_forward.1} parent=11 // pred_region
          %s204 = ssub.s32 128, 128
          %205 = vsyncadd [#allocation8], %s204
          %s207 = sshll.u32 [#allocation9], 4
          %s208 = int_to_ptr.vmem [resolvable:$true] %s207
          %210 = dma.hbm_to_vmem [thread:$0]  %s2, 128, %s208, [#allocation8]
        $region16: #{decoder_forward.1} parent=11 // pred_fallthru
          _
        // Predicated region
        $region17: #{decoder_forward.1} parent=11 // pred_check
          %p211 = pneg %p117
        $region18: #{decoder_forward.1} parent=11 // pred_check_branch
          %213 = sbr.rel (%p211) target = $region20
        $region19: #{decoder_forward.1} parent=11 // pred_region
          %s215 = ssub.s32 128, 128
          %216 = vsyncadd [#allocation11], %s215
          %s218 = sshll.u32 [#allocation10], 4
          %s219 = int_to_ptr.vmem [resolvable:$true] %s218
          %221 = dma.hbm_to_vmem [thread:$0]  %s3, 128, %s219, [#allocation11]
        $region20: #{decoder_forward.1} parent=11 // pred_fallthru
          _
        // Predicated region
        $region21: #{decoder_forward.1} parent=11 // pred_check
          %p222 = pneg %p138
        $region22: #{decoder_forward.1} parent=11 // pred_check_branch
          %224 = sbr.rel (%p222) target = $region24
        $region23: #{decoder_forward.1} parent=11 // pred_region
          %s226 = ssub.s32 128, 128
          %227 = vsyncadd [#allocation11], %s226
          %s229 = sshll.u32 [#allocation12], 4
          %s230 = int_to_ptr.vmem [resolvable:$true] %s229
          %232 = dma.hbm_to_vmem [thread:$0]  %s4, 128, %s230, [#allocation11]
        $region24: #{decoder_forward.1} parent=11 // pred_fallthru
          _
        // Predicated region
        $region25: #{decoder_forward.1} parent=11 // pred_check
          %p233 = pneg %p159
        $region26: #{decoder_forward.1} parent=11 // pred_check_branch
          %235 = sbr.rel (%p233) target = $region28
        $region27: #{decoder_forward.1} parent=11 // pred_region
          %s237 = ssub.s32 128, 128
          %238 = vsyncadd [#allocation14], %s237
          %s240 = sshll.u32 [#allocation13], 4
          %s241 = int_to_ptr.vmem [resolvable:$true] %s240
          %243 = dma.hbm_to_vmem [thread:$0]  %s5, 128, %s241, [#allocation14]
        $region28: #{decoder_forward.1} parent=11 // pred_fallthru
          _
      $region12: #{decoder_forward.1} parent=5 // pred_fallthru
        _
      %p244 = scmp.lt.s32.totalorder %s23, 2
      // Predicated region
      $region29: #{decoder_forward.1} parent=5 // pred_check
        %p245 = pneg %p244
      $region30: #{decoder_forward.1} parent=5 // pred_check_branch
        %247 = sbr.rel (%p245) target = $region32
      $region31: #{decoder_forward.1} parent=5 // pred_region
        // Predicated region
        $region33: #{decoder_forward.1} parent=31 // pred_check
          %p248 = pneg %p43
        $region34: #{decoder_forward.1} parent=31 // pred_check_branch
          %250 = sbr.rel (%p248) target = $region36
        $region35: #{decoder_forward.1} parent=31 // pred_region
          %s251 = sand.u32 %s33, 1
          %s252 = scalar_lea.sflag [#allocation5], %s251
          %s253 = sand.u32 %s33, 1
          %s254 = smul.addr %s253, 24
          %s255 = scalar_lea.vmem [#allocation4], %s254
          %s257 = ssub.s32 384, 384
          %258 = vsyncadd %s252, %s257
          %s259 = smul.addr %s23, 3
          %s260 = smul.addr %s259, 128
          %s261 = scalar_lea.hbm %s0, %s260
          %s263 = sshll.u32 %s255, 4
          %s264 = int_to_ptr.vmem [resolvable:$true] %s263
          %266 = dma.hbm_to_vmem [thread:$0]  %s261, 384, %s264, %s252
        $region36: #{decoder_forward.1} parent=31 // pred_fallthru
          _
        // Predicated region
        $region37: #{decoder_forward.1} parent=31 // pred_check
          %p267 = pneg %p69
        $region38: #{decoder_forward.1} parent=31 // pred_check_branch
          %269 = sbr.rel (%p267) target = $region40
        $region39: #{decoder_forward.1} parent=31 // pred_region
          %s270 = sand.u32 %s23, 1
          %s271 = scalar_lea.sflag [#allocation8], %s270
          %s272 = sand.u32 %s59, 1
          %s273 = smul.addr %s272, 12
          %s274 = scalar_lea.vmem [#allocation7], %s273
          %s276 = ssub.s32 192, 192
          %277 = vsyncadd %s271, %s276
          %s278 = smul.addr %s23, 3
          %s279 = smul.addr %s278, 64
          %s280 = scalar_lea.hbm %s1, %s279
          %s282 = sshll.u32 %s274, 4
          %s283 = int_to_ptr.vmem [resolvable:$true] %s282
          %285 = dma.hbm_to_vmem [thread:$0]  %s280, 192, %s283, %s271
        $region40: #{decoder_forward.1} parent=31 // pred_fallthru
          _
      $region32: #{decoder_forward.1} parent=5 // pred_fallthru
        _
      %p286 = scmp.le.s32.totalorder 1, %s23
      %p287 = scmp.lt.s32.totalorder %s23, 3
      %p288 = pnand %p286, %p287
      %p289 = pneg %p288
      // Predicated region
      $region41: #{decoder_forward.1} parent=5 // pred_check
        _
      $region42: #{decoder_forward.1} parent=5 // pred_check_branch
        %291 = sbr.rel (%p288) target = $region44
      $region43: #{decoder_forward.1} parent=5 // pred_region
        %s292 = ssub.s32 %s23, 1
        %s293 = sand.u32 %s36, 1
        %s294 = scalar_lea.sflag [#allocation5], %s293
        %s295 = sand.u32 %s36, 1
        %s296 = smul.addr %s295, 24
        %s297 = scalar_lea.vmem [#allocation4], %s296
        // Predicated region
        $region45: #{decoder_forward.1} parent=43 // pred_check
          %p298 = pneg %p49
        $region46: #{decoder_forward.1} parent=43 // pred_check_branch
          %300 = sbr.rel (%p298) target = $region48
        $region47: #{decoder_forward.1} parent=43 // pred_region
          %301 = dma.done %s294, 384
        $region48: #{decoder_forward.1} parent=43 // pred_fallthru
          _
        %s302 = sand.u32 %s28, 1
        %s303 = scalar_lea.sflag [#allocation8], %s302
        %s304 = sand.u32 %s62, 1
        %s305 = smul.addr %s304, 12
        %s306 = scalar_lea.vmem [#allocation7], %s305
        // Predicated region
        $region49: #{decoder_forward.1} parent=43 // pred_check
          %p307 = pneg %p75
        $region50: #{decoder_forward.1} parent=43 // pred_check_branch
          %309 = sbr.rel (%p307) target = $region52
        $region51: #{decoder_forward.1} parent=43 // pred_region
          %310 = dma.done %s303, 192
        $region52: #{decoder_forward.1} parent=43 // pred_fallthru
          _
        // Predicated region
        $region53: #{decoder_forward.1} parent=43 // pred_check
          %p311 = pneg %p96
        $region54: #{decoder_forward.1} parent=43 // pred_check_branch
          %313 = sbr.rel (%p311) target = $region56
        $region55: #{decoder_forward.1} parent=43 // pred_region
          %314 = dma.done [#allocation8], 128
        $region56: #{decoder_forward.1} parent=43 // pred_fallthru
          _
        // Predicated region
        $region57: #{decoder_forward.1} parent=43 // pred_check
          %p315 = pneg %p117
        $region58: #{decoder_forward.1} parent=43 // pred_check_branch
          %317 = sbr.rel (%p315) target = $region60
        $region59: #{decoder_forward.1} parent=43 // pred_region
          %318 = dma.done [#allocation11], 128
        $region60: #{decoder_forward.1} parent=43 // pred_fallthru
          _
        // Predicated region
        $region61: #{decoder_forward.1} parent=43 // pred_check
          %p319 = pneg %p138
        $region62: #{decoder_forward.1} parent=43 // pred_check_branch
          %321 = sbr.rel (%p319) target = $region64
        $region63: #{decoder_forward.1} parent=43 // pred_region
          %322 = dma.done [#allocation11], 128
        $region64: #{decoder_forward.1} parent=43 // pred_fallthru
          _
        // Predicated region
        $region65: #{decoder_forward.1} parent=43 // pred_check
          %p323 = pneg %p159
        $region66: #{decoder_forward.1} parent=43 // pred_check_branch
          %325 = sbr.rel (%p323) target = $region68
        $region67: #{decoder_forward.1} parent=43 // pred_region
          %326 = dma.done [#allocation14], 128
        $region68: #{decoder_forward.1} parent=43 // pred_fallthru
          _
        %s327 = sand.u32 %s36, 1
        %s328 = scalar_lea.sflag [#allocation5], %s327
        %s329 = sand.u32 %s36, 1
        %s330 = smul.addr %s329, 24
        %s331 = scalar_lea.vmem [#allocation4], %s330
        %p332 = pneg %p49
        %p333 = pneg %p46
        %s334 = sand.u32 %s28, 1
        %s335 = scalar_lea.sflag [#allocation8], %s334
        %s336 = sand.u32 %s62, 1
        %s337 = smul.addr %s336, 12
        %s338 = scalar_lea.vmem [#allocation7], %s337
        %p339 = pneg %p75
        %p340 = pneg %p72
        %p341 = pneg %p96
        %p342 = pneg %p93
        %p343 = pneg %p117
        %p344 = pneg %p114
        %p345 = pneg %p138
        %p346 = pneg %p135
        %p347 = pneg %p159
        %p348 = pneg %p156
        %p349 = pneg %p185
        %p350 = pneg %p182
        %s351 = sand.u32 %s172, 1
        %s352 = scalar_lea.sflag [#allocation6], %s351
        %s353 = sand.u32 %s172, 1
        %s354 = smul.addr %s353, 24
        %s355 = scalar_lea.vmem [#allocation15], %s354
        %v356 = vlaneseq
        %v357 = vand.u32 %v356, 127
        %v358 = vadd.s32 %v357, 128
        %v359 = vadd.s32 %v357, 256
        %vm360 = vcmp.lt.s32.totalorder %v357, 0
        %v361 = vsub.s32 0, %v357
        %v362 = vsel %vm360, %v361, %v357
        %v363 = vmul.u32.u64.compose %v362, 3817748708
        %v364 = vextract.low.u32 %v363
        %v365 = vextract.high.u32 %v363
        %v366 = vshrl.u32 %v365, 4
        %v367 = vmul.u32 %v366, 18
        %v368 = vsub.s32 %v362, %v367
        %v369 = vsub.s32 0, %v368
        %v370 = vsel %vm360, %v369, %v368
        %vm371 = vcmp.lt.s32.totalorder %v358, 0
        %v372 = vsub.s32 0, %v358
        %v373 = vsel %vm371, %v372, %v358
        %v374 = vmul.u32.u64.compose %v373, 3817748708
        %v375 = vextract.low.u32 %v374
        %v376 = vextract.high.u32 %v374
        %v377 = vshrl.u32 %v376, 4
        %v378 = vmul.u32 %v377, 18
        %v379 = vsub.s32 %v373, %v378
        %v380 = vsub.s32 0, %v379
        %v381 = vsel %vm371, %v380, %v379
        %vm382 = vcmp.lt.s32.totalorder %v359, 0
        %v383 = vsub.s32 0, %v359
        %v384 = vsel %vm382, %v383, %v359
        %v385 = vmul.u32.u64.compose %v384, 3817748708
        %v386 = vextract.low.u32 %v385
        %v387 = vextract.high.u32 %v385
        %v388 = vshrl.u32 %v387, 4
        %v389 = vmul.u32 %v388, 18
        %v390 = vsub.s32 %v384, %v389
        %v391 = vsub.s32 0, %v390
        %v392 = vsel %vm382, %v391, %v390
        %vm393 = vcmp.ne.s32.totalorder %v370, 0
        %vm394 = vcmp.ne.s32.totalorder %v381, 0
        %vm395 = vcmp.ne.s32.totalorder %v392, 0
        %vm396 = vcmp.lt.s32.totalorder %v370, 0
        %vm397 = vcmp.lt.s32.totalorder %v381, 0
        %vm398 = vcmp.lt.s32.totalorder %v392, 0
        %vm399 = vmand %vm396, %vm393
        %vm400 = vmand %vm397, %vm394
        %vm401 = vmand %vm398, %vm395
        %v402 = vadd.s32 %v370, 18
        %v403 = vadd.s32 %v381, 18
        %v404 = vadd.s32 %v392, 18
        %v405 = vsel %vm399, %v402, %v370
        %v406 = vsel %vm400, %v403, %v381
        %v407 = vsel %vm401, %v404, %v392
        %vm408 = vcmp.lt.s32.totalorder %v405, 16
        %vm409 = vcmp.lt.s32.totalorder %v406, 16
        %vm410 = vcmp.lt.s32.totalorder %v407, 16
        %v411 = vsel %vm408, 1, 0
        %v412 = vsel %vm409, 1, 0
        %v413 = vsel %vm410, 1, 0
        %v414 = vcvt.s32.f32 %v411
        %v415 = vcvt.s32.f32 %v412
        %v416 = vcvt.s32.f32 %v413
        %v417 = vld [vmem:[%s297] sm:$0xff]
        %v418 = vld [vmem:[%s297 + $0x8] sm:$0xff]
        %v419 = vld [vmem:[%s297 + $0x10] sm:$0xff]
        %420 = vst [vmem:[#allocation2] sm:$0xff] %v417
        %421 = vst [vmem:[#allocation2 + $0x8] sm:$0xff] %v418
        %vm422 = vcmask 556032
        %423 = vst.msk [vmem:[#allocation2 + $0x10] sm:$0xff] %vm422, %v419
        %v424 = vld [vmem:[%s306] sm:$0xff]
        %v425 = vld [vmem:[%s306 + $0x8] sm:$0xf]
        %v427 = vcombine.high %v424, %v424
        %429 = vst [vmem:[#allocation2 + $0x18] sm:$0xf] %v424
        %430 = vst [vmem:[#allocation2 + $0x20] sm:$0xf] %v427
        %vm431 = vcmask 551936
        %432 = vst.msk [vmem:[#allocation2 + $0x28] sm:$0xf] %vm431, %v425
        %v433 = vld [vmem:[#allocation10] sm:$0xff]
        %v434 = vld [vmem:[#allocation2] sm:$0xff]
        %v435 = vld [vmem:[#allocation2 + $0x8] sm:$0xff]
        %v436 = vld [vmem:[#allocation2 + $0x10] sm:$0xff]
        %v437 = vld [vmem:[#allocation2 + $0x18] sm:$0xf]
        %v438 = vld [vmem:[#allocation2 + $0x20] sm:$0xf]
        %v439 = vld [vmem:[#allocation2 + $0x28] sm:$0xf]
        %440 = vst [vmem:[#allocation3] sm:$0xff] %v434
        %441 = vst [vmem:[#allocation3 + $0x8] sm:$0xff] %v435
        %vm442 = vcmask 244736
        %443 = vst.msk [vmem:[#allocation3 + $0x10] sm:$0xff] %vm442, %v436
        %444 = vst [vmem:[#allocation3 + $0x18] sm:$0xf] %v437
        %445 = vst [vmem:[#allocation3 + $0x20] sm:$0xf] %v438
        %vm446 = vcmask 240640
        %447 = vst.msk [vmem:[#allocation3 + $0x28] sm:$0xf] %vm446, %v439
        %v448 = vld [vmem:[#allocation2] sm:$0xff]
        %v449 = vld [vmem:[#allocation2 + $0x8] sm:$0xff]
        %v450 = vld [vmem:[#allocation2 + $0x10] sm:$0xff]
        %v451 = vld [vmem:[#allocation2 + $0x18] sm:$0xf]
        %v452 = vld [vmem:[#allocation2 + $0x20] sm:$0xf]
        %v453 = vld [vmem:[#allocation2 + $0x28] sm:$0xf]
        %vm460 = vcmask 1043456
        %v461 = vrot.slane %v448, 4
        %v462 = vrot.slane %v449, 4
        %v463 = vrot.slane %v450, 4
        %v464 = vrot.slane %v451, 4
        %v465 = vsel %vm460, %v461, %v464
        %v466 = vrot.slane %v452, 4
        %v467 = vsel %vm460, %v462, %v466
        %v468 = vrot.slane %v453, 4
        %v469 = vsel %vm460, %v463, %v468
        %470 = vrot.lane.b32.xlu0 %v461, 127
        %v471 = vpop.permute.xlu0 %470
        %472 = vrot.lane.b32.xlu0 %v462, 127
        %v473 = vpop.permute.xlu0 %472
        %474 = vrot.lane.b32.xlu0 %v463, 127
        %v475 = vpop.permute.xlu0 %474
        %476 = vrot.lane.b32.xlu0 %v465, 127
        %v477 = vpop.permute.xlu0 %476
        %478 = vrot.lane.b32.xlu0 %v467, 127
        %v479 = vpop.permute.xlu0 %478
        %480 = vrot.lane.b32.xlu0 %v469, 127
        %v481 = vpop.permute.xlu0 %480
        %vm482 = vcmask 1039360
        %v483 = vsel %vm482, %v471, %v473
        %v484 = vsel %vm482, %v473, %v475
        %v485 = vsel %vm482, %v477, %v479
        %v486 = vsel %vm482, %v479, %v481
        %493 = vst [vmem:[#allocation3 + $0x18] sm:$0xf0] %v483
        %494 = vst [vmem:[#allocation3 + $0x20] sm:$0xf0] %v484
        %vm495 = vcmask 244740
        %496 = vst.msk [vmem:[#allocation3 + $0x28] sm:$0xf0] %vm495, %v475
        %497 = vst [vmem:[#allocation3 + $0x30] sm:$0xff] %v485
        %498 = vst [vmem:[#allocation3 + $0x38] sm:$0xff] %v486
        %499 = vst.msk [vmem:[#allocation3 + $0x40] sm:$0xff] %vm442, %v481
        %v500 = vld [vmem:[#allocation2] sm:$0xff]
        %v501 = vld [vmem:[#allocation2 + $0x8] sm:$0xff]
        %v502 = vld [vmem:[#allocation2 + $0x10] sm:$0xff]
        %v503 = vld [vmem:[#allocation2 + $0x18] sm:$0xf]
        %v504 = vld [vmem:[#allocation2 + $0x20] sm:$0xf]
        %v505 = vld [vmem:[#allocation2 + $0x28] sm:$0xf]
        %512 = vrot.lane.b32.xlu0 %v500, 126
        %v513 = vpop.permute.xlu0 %512
        %514 = vrot.lane.b32.xlu0 %v501, 126
        %v515 = vpop.permute.xlu0 %514
        %516 = vrot.lane.b32.xlu0 %v502, 126
        %v517 = vpop.permute.xlu0 %516
        %518 = vrot.lane.b32.xlu0 %v503, 126
        %v519 = vpop.permute.xlu0 %518
        %520 = vrot.lane.b32.xlu0 %v504, 126
        %v521 = vpop.permute.xlu0 %520
        %522 = vrot.lane.b32.xlu0 %v505, 126
        %v523 = vpop.permute.xlu0 %522
        %vm524 = vcmask 1031168
        %v525 = vsel %vm524, %v513, %v515
        %v526 = vsel %vm524, %v515, %v517
        %v527 = vsel %vm524, %v519, %v521
        %v528 = vsel %vm524, %v521, %v523
        %535 = vst [vmem:[#allocation3 + $0x48] sm:$0xff] %v525
        %536 = vst [vmem:[#allocation3 + $0x50] sm:$0xff] %v526
        %537 = vst.msk [vmem:[#allocation3 + $0x58] sm:$0xff] %vm442, %v517
        %538 = vst [vmem:[#allocation3 + $0x60] sm:$0xf] %v527
        %539 = vst [vmem:[#allocation3 + $0x68] sm:$0xf] %v528
        %540 = vst.msk [vmem:[#allocation3 + $0x70] sm:$0xf] %vm446, %v523
        %v541 = vld [vmem:[#allocation2] sm:$0xff]
        %v542 = vld [vmem:[#allocation2 + $0x8] sm:$0xff]
        %v543 = vld [vmem:[#allocation2 + $0x10] sm:$0xff]
        %v544 = vld [vmem:[#allocation2 + $0x18] sm:$0xf]
        %v545 = vld [vmem:[#allocation2 + $0x20] sm:$0xf]
        %v546 = vld [vmem:[#allocation2 + $0x28] sm:$0xf]
        %v553 = vrot.slane %v541, 4
        %v554 = vrot.slane %v542, 4
        %v555 = vrot.slane %v543, 4
        %v556 = vrot.slane %v544, 4
        %v557 = vsel %vm460, %v553, %v556
        %v558 = vrot.slane %v545, 4
        %v559 = vsel %vm460, %v554, %v558
        %v560 = vrot.slane %v546, 4
        %v561 = vsel %vm460, %v555, %v560
        %562 = vrot.lane.b32.xlu0 %v553, 110
        %v563 = vpop.permute.xlu0 %562
        %564 = vrot.lane.b32.xlu0 %v554, 110
        %v565 = vpop.permute.xlu0 %564
        %566 = vrot.lane.b32.xlu0 %v555, 110
        %v567 = vpop.permute.xlu0 %566
        %568 = vrot.lane.b32.xlu0 %v557, 110
        %v569 = vpop.permute.xlu0 %568
        %570 = vrot.lane.b32.xlu0 %v559, 110
        %v571 = vpop.permute.xlu0 %570
        %572 = vrot.lane.b32.xlu0 %v561, 110
        %v573 = vpop.permute.xlu0 %572
        %vm574 = vcmask 900096
        %v575 = vsel %vm574, %v563, %v565
        %v576 = vsel %vm574, %v565, %v567
        %v577 = vsel %vm574, %v569, %v571
        %v578 = vsel %vm574, %v571, %v573
        %585 = vst [vmem:[#allocation3 + $0x60] sm:$0xf0] %v575
        %586 = vst [vmem:[#allocation3 + $0x68] sm:$0xf0] %v576
        %587 = vst.msk [vmem:[#allocation3 + $0x70] sm:$0xf0] %vm495, %v567
        %588 = vst [vmem:[#allocation3 + $0x78] sm:$0xff] %v577
        %589 = vst [vmem:[#allocation3 + $0x80] sm:$0xff] %v578
        %590 = vst.msk [vmem:[#allocation3 + $0x88] sm:$0xff] %vm442, %v573
        %v591 = vld [vmem:[#allocation2] sm:$0xff]
        %v592 = vld [vmem:[#allocation2 + $0x8] sm:$0xff]
        %v593 = vld [vmem:[#allocation2 + $0x10] sm:$0xff]
        %v594 = vld [vmem:[#allocation2 + $0x18] sm:$0xf]
        %v595 = vld [vmem:[#allocation2 + $0x20] sm:$0xf]
        %v596 = vld [vmem:[#allocation2 + $0x28] sm:$0xf]
        %603 = vrot.lane.b32.xlu0 %v591, 109
        %v604 = vpop.permute.xlu0 %603
        %605 = vrot.lane.b32.xlu0 %v592, 109
        %v606 = vpop.permute.xlu0 %605
        %607 = vrot.lane.b32.xlu0 %v593, 109
        %v608 = vpop.permute.xlu0 %607
        %609 = vrot.lane.b32.xlu0 %v594, 109
        %v610 = vpop.permute.xlu0 %609
        %611 = vrot.lane.b32.xlu0 %v595, 109
        %v612 = vpop.permute.xlu0 %611
        %613 = vrot.lane.b32.xlu0 %v596, 109
        %v614 = vpop.permute.xlu0 %613
        %vm615 = vcmask 891904
        %v616 = vsel %vm615, %v604, %v606
        %v617 = vsel %vm615, %v606, %v608
        %v618 = vsel %vm615, %v610, %v612
        %v619 = vsel %vm615, %v612, %v614
        %626 = vst [vmem:[#allocation3 + $0x90] sm:$0xff] %v616
        %627 = vst [vmem:[#allocation3 + $0x98] sm:$0xff] %v617
        %628 = vst.msk [vmem:[#allocation3 + $0xa0] sm:$0xff] %vm442, %v608
        %629 = vst [vmem:[#allocation3 + $0xa8] sm:$0xf] %v618
        %630 = vst [vmem:[#allocation3 + $0xb0] sm:$0xf] %v619
        %631 = vst.msk [vmem:[#allocation3 + $0xb8] sm:$0xf] %vm446, %v614
        %v632 = vld [vmem:[#allocation2] sm:$0xff]
        %v633 = vld [vmem:[#allocation2 + $0x8] sm:$0xff]
        %v634 = vld [vmem:[#allocation2 + $0x10] sm:$0xff]
        %v635 = vld [vmem:[#allocation2 + $0x18] sm:$0xf]
        %v636 = vld [vmem:[#allocation2 + $0x20] sm:$0xf]
        %v637 = vld [vmem:[#allocation2 + $0x28] sm:$0xf]
        %v644 = vrot.slane %v632, 4
        %v645 = vrot.slane %v633, 4
        %v646 = vrot.slane %v634, 4
        %v647 = vrot.slane %v635, 4
        %v648 = vsel %vm460, %v644, %v647
        %v649 = vrot.slane %v636, 4
        %v650 = vsel %vm460, %v645, %v649
        %v651 = vrot.slane %v637, 4
        %v652 = vsel %vm460, %v646, %v651
        %653 = vrot.lane.b32.xlu0 %v644, 108
        %v654 = vpop.permute.xlu0 %653
        %655 = vrot.lane.b32.xlu0 %v645, 108
        %v656 = vpop.permute.xlu0 %655
        %657 = vrot.lane.b32.xlu0 %v646, 108
        %v658 = vpop.permute.xlu0 %657
        %659 = vrot.lane.b32.xlu0 %v648, 108
        %v660 = vpop.permute.xlu0 %659
        %661 = vrot.lane.b32.xlu0 %v650, 108
        %v662 = vpop.permute.xlu0 %661
        %663 = vrot.lane.b32.xlu0 %v652, 108
        %v664 = vpop.permute.xlu0 %663
        %vm665 = vcmask 883712
        %v666 = vsel %vm665, %v654, %v656
        %v667 = vsel %vm665, %v656, %v658
        %v668 = vsel %vm665, %v660, %v662
        %v669 = vsel %vm665, %v662, %v664
        %676 = vst [vmem:[#allocation3 + $0xa8] sm:$0xf0] %v666
        %677 = vst [vmem:[#allocation3 + $0xb0] sm:$0xf0] %v667
        %678 = vst.msk [vmem:[#allocation3 + $0xb8] sm:$0xf0] %vm495, %v658
        %679 = vst [vmem:[#allocation3 + $0xc0] sm:$0xff] %v668
        %680 = vst [vmem:[#allocation3 + $0xc8] sm:$0xff] %v669
        %681 = vst.msk [vmem:[#allocation3 + $0xd0] sm:$0xff] %vm442, %v664
        %v682 = vld [vmem:[#allocation2] sm:$0xff]
        %v683 = vld [vmem:[#allocation2 + $0x8] sm:$0xff]
        %v684 = vld [vmem:[#allocation2 + $0x10] sm:$0xff]
        %v685 = vld [vmem:[#allocation2 + $0x18] sm:$0xf]
        %v686 = vld [vmem:[#allocation2 + $0x20] sm:$0xf]
        %v687 = vld [vmem:[#allocation2 + $0x28] sm:$0xf]
        %694 = vrot.lane.b32.xlu0 %v682, 92
        %v695 = vpop.permute.xlu0 %694
        %696 = vrot.lane.b32.xlu0 %v683, 92
        %v697 = vpop.permute.xlu0 %696
        %698 = vrot.lane.b32.xlu0 %v684, 92
        %v699 = vpop.permute.xlu0 %698
        %700 = vrot.lane.b32.xlu0 %v685, 92
        %v701 = vpop.permute.xlu0 %700
        %702 = vrot.lane.b32.xlu0 %v686, 92
        %v703 = vpop.permute.xlu0 %702
        %704 = vrot.lane.b32.xlu0 %v687, 92
        %v705 = vpop.permute.xlu0 %704
        %vm706 = vcmask 752640
        %v707 = vsel %vm706, %v695, %v697
        %v708 = vsel %vm706, %v697, %v699
        %v709 = vsel %vm706, %v701, %v703
        %v710 = vsel %vm706, %v703, %v705
        %717 = vst [vmem:[#allocation3 + $0xd8] sm:$0xff] %v707
        %718 = vst [vmem:[#allocation3 + $0xe0] sm:$0xff] %v708
        %719 = vst.msk [vmem:[#allocation3 + $0xe8] sm:$0xff] %vm442, %v699
        %720 = vst [vmem:[#allocation3 + $0xf0] sm:$0xf] %v709
        %721 = vst [vmem:[#allocation3 + $0xf8] sm:$0xf] %v710
        %722 = vst.msk [vmem:[#allocation3 + $0x100] sm:$0xf] %vm446, %v705
        %v723 = vld [vmem:[#allocation2] sm:$0xff]
        %v724 = vld [vmem:[#allocation2 + $0x8] sm:$0xff]
        %v725 = vld [vmem:[#allocation2 + $0x10] sm:$0xff]
        %v726 = vld [vmem:[#allocation2 + $0x18] sm:$0xf]
        %v727 = vld [vmem:[#allocation2 + $0x20] sm:$0xf]
        %v728 = vld [vmem:[#allocation2 + $0x28] sm:$0xf]
        %v735 = vrot.slane %v723, 4
        %v736 = vrot.slane %v724, 4
        %v737 = vrot.slane %v725, 4
        %v738 = vrot.slane %v726, 4
        %v739 = vsel %vm460, %v735, %v738
        %v740 = vrot.slane %v727, 4
        %v741 = vsel %vm460, %v736, %v740
        %v742 = vrot.slane %v728, 4
        %v743 = vsel %vm460, %v737, %v742
        %744 = vrot.lane.b32.xlu0 %v735, 91
        %v745 = vpop.permute.xlu0 %744
        %746 = vrot.lane.b32.xlu0 %v736, 91
        %v747 = vpop.permute.xlu0 %746
        %748 = vrot.lane.b32.xlu0 %v737, 91
        %v749 = vpop.permute.xlu0 %748
        %750 = vrot.lane.b32.xlu0 %v739, 91
        %v751 = vpop.permute.xlu0 %750
        %752 = vrot.lane.b32.xlu0 %v741, 91
        %v753 = vpop.permute.xlu0 %752
        %754 = vrot.lane.b32.xlu0 %v743, 91
        %v755 = vpop.permute.xlu0 %754
        %vm756 = vcmask 744448
        %v757 = vsel %vm756, %v745, %v747
        %v758 = vsel %vm756, %v747, %v749
        %v759 = vsel %vm756, %v751, %v753
        %v760 = vsel %vm756, %v753, %v755
        %767 = vst [vmem:[#allocation3 + $0xf0] sm:$0xf0] %v757
        %768 = vst [vmem:[#allocation3 + $0xf8] sm:$0xf0] %v758
        %769 = vst.msk [vmem:[#allocation3 + $0x100] sm:$0xf0] %vm495, %v749
        %770 = vst [vmem:[#allocation3 + $0x108] sm:$0xff] %v759
        %771 = vst [vmem:[#allocation3 + $0x110] sm:$0xff] %v760
        %772 = vst.msk [vmem:[#allocation3 + $0x118] sm:$0xff] %vm442, %v755
        %v773 = vld [vmem:[#allocation2] sm:$0xff]
        %v774 = vld [vmem:[#allocation2 + $0x8] sm:$0xff]
        %v775 = vld [vmem:[#allocation2 + $0x10] sm:$0xff]
        %v776 = vld [vmem:[#allocation2 + $0x18] sm:$0xf]
        %v777 = vld [vmem:[#allocation2 + $0x20] sm:$0xf]
        %v778 = vld [vmem:[#allocation2 + $0x28] sm:$0xf]
        %785 = vrot.lane.b32.xlu0 %v773, 90
        %v786 = vpop.permute.xlu0 %785
        %787 = vrot.lane.b32.xlu0 %v774, 90
        %v788 = vpop.permute.xlu0 %787
        %789 = vrot.lane.b32.xlu0 %v775, 90
        %v790 = vpop.permute.xlu0 %789
        %791 = vrot.lane.b32.xlu0 %v776, 90
        %v792 = vpop.permute.xlu0 %791
        %793 = vrot.lane.b32.xlu0 %v777, 90
        %v794 = vpop.permute.xlu0 %793
        %795 = vrot.lane.b32.xlu0 %v778, 90
        %v796 = vpop.permute.xlu0 %795
        %vm797 = vcmask 736256
        %v798 = vsel %vm797, %v786, %v788
        %v799 = vsel %vm797, %v788, %v790
        %v800 = vsel %vm797, %v792, %v794
        %v801 = vsel %vm797, %v794, %v796
        %808 = vst [vmem:[#allocation3 + $0x120] sm:$0xff] %v798
        %809 = vst [vmem:[#allocation3 + $0x128] sm:$0xff] %v799
        %810 = vst.msk [vmem:[#allocation3 + $0x130] sm:$0xff] %vm442, %v790
        %811 = vst [vmem:[#allocation3 + $0x138] sm:$0xf] %v800
        %812 = vst [vmem:[#allocation3 + $0x140] sm:$0xf] %v801
        %813 = vst.msk [vmem:[#allocation3 + $0x148] sm:$0xf] %vm446, %v796
        %v814 = vld [vmem:[#allocation9] sm:$0xff]
        %v815 = vld [vmem:[#allocation3] sm:$0xff]
        %v816 = vld [vmem:[#allocation3 + $0x8] sm:$0xff]
        %v817 = vld [vmem:[#allocation3 + $0x10] sm:$0xff]
        %v818 = vld [vmem:[#allocation3 + $0x18] sm:$0xff]
        %v819 = vld [vmem:[#allocation3 + $0x20] sm:$0xff]
        %v820 = vld [vmem:[#allocation3 + $0x28] sm:$0xff]
        %v821 = vld [vmem:[#allocation3 + $0x30] sm:$0xff]
        %v822 = vld [vmem:[#allocation3 + $0x38] sm:$0xff]
        %v823 = vld [vmem:[#allocation3 + $0x40] sm:$0xff]
        %v824 = vld [vmem:[#allocation3 + $0x48] sm:$0xff]
        %v825 = vld [vmem:[#allocation3 + $0x50] sm:$0xff]
        %v826 = vld [vmem:[#allocation3 + $0x58] sm:$0xff]
        %v827 = vld [vmem:[#allocation3 + $0x60] sm:$0xff]
        %v828 = vld [vmem:[#allocation3 + $0x68] sm:$0xff]
        %v829 = vld [vmem:[#allocation3 + $0x70] sm:$0xff]
        %v830 = vld [vmem:[#allocation3 + $0x78] sm:$0xff]
        %v831 = vld [vmem:[#allocation3 + $0x80] sm:$0xff]
        %v832 = vld [vmem:[#allocation3 + $0x88] sm:$0xff]
        %v833 = vld [vmem:[#allocation3 + $0x90] sm:$0xff]
        %v834 = vld [vmem:[#allocation3 + $0x98] sm:$0xff]
        %v835 = vld [vmem:[#allocation3 + $0xa0] sm:$0xff]
        %v836 = vld [vmem:[#allocation3 + $0xa8] sm:$0xff]
        %v837 = vld [vmem:[#allocation3 + $0xb0] sm:$0xff]
        %v838 = vld [vmem:[#allocation3 + $0xb8] sm:$0xff]
        %v839 = vld [vmem:[#allocation3 + $0xc0] sm:$0xff]
        %v840 = vld [vmem:[#allocation3 + $0xc8] sm:$0xff]
        %v841 = vld [vmem:[#allocation3 + $0xd0] sm:$0xff]
        %v842 = vld [vmem:[#allocation3 + $0xd8] sm:$0xff]
        %v843 = vld [vmem:[#allocation3 + $0xe0] sm:$0xff]
        %v844 = vld [vmem:[#allocation3 + $0xe8] sm:$0xff]
        %v845 = vld [vmem:[#allocation3 + $0xf0] sm:$0xff]
        %v846 = vld [vmem:[#allocation3 + $0xf8] sm:$0xff]
        %v847 = vld [vmem:[#allocation3 + $0x100] sm:$0xff]
        %v848 = vld [vmem:[#allocation3 + $0x108] sm:$0xff]
        %v849 = vld [vmem:[#allocation3 + $0x110] sm:$0xff]
        %v850 = vld [vmem:[#allocation3 + $0x118] sm:$0xff]
        %v851 = vld [vmem:[#allocation3 + $0x120] sm:$0xff]
        %v852 = vld [vmem:[#allocation3 + $0x128] sm:$0xff]
        %v853 = vld [vmem:[#allocation3 + $0x130] sm:$0xff]
        %v854 = vld [vmem:[#allocation3 + $0x138] sm:$0xf]
        %v855 = vld [vmem:[#allocation3 + $0x140] sm:$0xf]
        %v856 = vld [vmem:[#allocation3 + $0x148] sm:$0xf]
        %858 = vset.pattern.permute.xlu0 0
        %859 = vperm.xlu0 %858, %v433
        %v860 = vpop.permute.xlu0 %859
        %v863 = vsel %vm665, %v814, 0
        %v866 = vsel %vm460, %v854, 0
        %v869 = vsel %vm460, %v855, 0
        %v872 = vsel %vm460, %v856, 0
        %874 = vmatprep.subr.mxu0 %v816
        %875 = vmatpush1.msra.mxu0 %v815
        %876 = vmatprep.subr.mxu0 %v819
        %877 = vmatpush1.msra.mxu0 %v818
        %878 = vmatprep.subr.mxu0 %v822
        %879 = vmatpush1.msra.mxu0 %v821
        %880 = vmatprep.subr.mxu0 %v825
        %881 = vmatpush1.msra.mxu0 %v824
        %882 = vmatprep.subr.mxu0 %v828
        %883 = vmatpush1.msra.mxu0 %v827
        %884 = vmatprep.subr.mxu0 %v831
        %885 = vmatpush1.msra.mxu0 %v830
        %886 = vmatprep.subr.mxu0 %v834
        %887 = vmatpush1.msra.mxu0 %v833
        %888 = vmatprep.subr.mxu0 %v837
        %889 = vmatpush1.msra.mxu0 %v836
        %890 = vmatprep.subr.mxu0 %v840
        %891 = vmatpush1.msra.mxu0 %v839
        %892 = vmatprep.subr.mxu0 %v843
        %893 = vmatpush1.msra.mxu0 %v842
        %894 = vmatprep.subr.mxu0 %v846
        %895 = vmatpush1.msra.mxu0 %v845
        %896 = vmatprep.subr.mxu0 %v849
        %897 = vmatpush1.msra.mxu0 %v848
        %898 = vmatprep.subr.mxu0 %v852
        %899 = vmatpush1.msra.mxu0 %v851
        %900 = vmatprep.subr.mxu0 %v869
        %901 = vmatpush1.msra.mxu0 %v866
        %902 = vmatprep.subr.mxu0 0.0
        %903 = vmatpush1.msra.mxu0 0.0
        %904 = vmatprep.subr.mxu0 0.0
        %905 = vmatpush1.msra.mxu0 0.0
        %906 = vmatprep.subr.mxu0 0.0
        %907 = vmatpush1.msra.mxu0 0.0
        %908 = vmatprep.subr.mxu0 0.0
        %909 = vmatpush1.msra.mxu0 0.0
        %910 = vmatprep.subr.mxu0 0.0
        %911 = vmatpush1.msra.mxu0 0.0
        %912 = vmatprep.subr.mxu0 0.0
        %913 = vmatpush1.msra.mxu0 0.0
        %914 = vmatprep.subr.mxu0 0.0
        %915 = vmatpush1.msra.mxu0 0.0
        %916 = vmatprep.subr.mxu0 0.0
        %917 = vmatpush1.msra.mxu0 0.0
        %918 = vmatprep.subr.mxu0 0.0
        %919 = vmatpush1.msra.mxu0 0.0
        %920 = vmatprep.subr.mxu0 0.0
        %921 = vmatpush1.msra.mxu0 0.0
        %922 = vmatprep.subr.mxu0 0.0
        %923 = vmatpush1.msra.mxu0 0.0
        %924 = vmatprep.subr.mxu0 0.0
        %925 = vmatpush1.msra.mxu0 0.0
        %926 = vmatprep.subr.mxu0 0.0
        %927 = vmatpush1.msra.mxu0 0.0
        %928 = vmatprep.subr.mxu0 0.0
        %929 = vmatpush1.msra.mxu0 0.0
        %930 = vmatprep.subr.mxu0 0.0
        %931 = vmatpush1.msra.mxu0 0.0
        %932 = vmatprep.subr.mxu0 0.0
        %933 = vmatpush1.msra.mxu0 0.0
        %934 = vmatprep.subr.mxu0 0.0
        %935 = vmatpush1.msra.mxu0 0.0
        %936 = vmatprep.subr.mxu0 0.0
        %937 = vmatpush1.msra.mxu0 0.0
        %938 = vmatprep.mubr.f32.mxu0 0.0
        %939 = vmatmul.mubr.f32.gmra.mrb[0].mxu0 %v863
        %v940 = vpop.f32.mrb[0].mxu0
        %v941 = vadd.f32 %v860, %v940
        %v942 = vpop.f32.mrb[0].mxu0
        %v943 = vadd.f32 %v860, %v942
        %944 = vdwg.mxu0
        %945 = vmatprep.subr.mxu0 0.0
        %946 = vmatpush1.msra.mxu0 %v817
        %947 = vmatprep.subr.mxu0 0.0
        %948 = vmatpush1.msra.mxu0 %v820
        %949 = vmatprep.subr.mxu0 0.0
        %950 = vmatpush1.msra.mxu0 %v823
        %951 = vmatprep.subr.mxu0 0.0
        %952 = vmatpush1.msra.mxu0 %v826
        %953 = vmatprep.subr.mxu0 0.0
        %954 = vmatpush1.msra.mxu0 %v829
        %955 = vmatprep.subr.mxu0 0.0
        %956 = vmatpush1.msra.mxu0 %v832
        %957 = vmatprep.subr.mxu0 0.0
        %958 = vmatpush1.msra.mxu0 %v835
        %959 = vmatprep.subr.mxu0 0.0
        %960 = vmatpush1.msra.mxu0 %v838
        %961 = vmatprep.subr.mxu0 0.0
        %962 = vmatpush1.msra.mxu0 %v841
        %963 = vmatprep.subr.mxu0 0.0
        %964 = vmatpush1.msra.mxu0 %v844
        %965 = vmatprep.subr.mxu0 0.0
        %966 = vmatpush1.msra.mxu0 %v847
        %967 = vmatprep.subr.mxu0 0.0
        %968 = vmatpush1.msra.mxu0 %v850
        %969 = vmatprep.subr.mxu0 0.0
        %970 = vmatpush1.msra.mxu0 %v853
        %971 = vmatprep.subr.mxu0 0.0
        %972 = vmatpush1.msra.mxu0 %v872
        %973 = vmatprep.subr.mxu0 0.0
        %974 = vmatpush1.msra.mxu0 0.0
        %975 = vmatprep.subr.mxu0 0.0
        %976 = vmatpush1.msra.mxu0 0.0
        %977 = vmatprep.subr.mxu0 0.0
        %978 = vmatpush1.msra.mxu0 0.0
        %979 = vmatprep.subr.mxu0 0.0
        %980 = vmatpush1.msra.mxu0 0.0
        %981 = vmatprep.subr.mxu0 0.0
        %982 = vmatpush1.msra.mxu0 0.0
        %983 = vmatprep.subr.mxu0 0.0
        %984 = vmatpush1.msra.mxu0 0.0
        %985 = vmatprep.subr.mxu0 0.0
        %986 = vmatpush1.msra.mxu0 0.0
        %987 = vmatprep.subr.mxu0 0.0
        %988 = vmatpush1.msra.mxu0 0.0
        %989 = vmatprep.subr.mxu0 0.0
        %990 = vmatpush1.msra.mxu0 0.0
        %991 = vmatprep.subr.mxu0 0.0
        %992 = vmatpush1.msra.mxu0 0.0
        %993 = vmatprep.subr.mxu0 0.0
        %994 = vmatpush1.msra.mxu0 0.0
        %995 = vmatprep.subr.mxu0 0.0
        %996 = vmatpush1.msra.mxu0 0.0
        %997 = vmatprep.subr.mxu0 0.0
        %998 = vmatpush1.msra.mxu0 0.0
        %999 = vmatprep.subr.mxu0 0.0
        %1000 = vmatpush1.msra.mxu0 0.0
        %1001 = vmatprep.subr.mxu0 0.0
        %1002 = vmatpush1.msra.mxu0 0.0
        %1003 = vmatprep.subr.mxu0 0.0
        %1004 = vmatpush1.msra.mxu0 0.0
        %1005 = vmatprep.subr.mxu0 0.0
        %1006 = vmatpush1.msra.mxu0 0.0
        %1007 = vmatprep.subr.mxu0 0.0
        %1008 = vmatpush1.msra.mxu0 0.0
        %1009 = vmatprep.mubr.f32.mxu0 0.0
        %1010 = vmatmul.mubr.f32.gmra.mrb[0].mxu0 %v863
        %v1011 = vpop.f32.mrb[0].mxu0
        %v1012 = vadd.f32 %v860, %v1011
        %v1013 = vpop.f32.mrb[0].mxu0
        %1014 = vdwg.mxu0
        %v1015 = vmul.f32 %v941, %v414
        %v1016 = vmul.f32 %v943, %v415
        %v1017 = vmul.f32 %v1012, %v416
        %1021 = vrot.lane.b32.xlu0 %v1015, 19
        %v1022 = vpop.permute.xlu0 %1021
        %1023 = vrot.lane.b32.xlu0 %v1016, 19
        %v1024 = vpop.permute.xlu0 %1023
        %1025 = vrot.lane.b32.xlu0 %v1017, 19
        %v1026 = vpop.permute.xlu0 %1025
        %vm1027 = vcmask 154624
        %v1028 = vsel %vm1027, %v1022, %v1024
        %v1029 = vsel %vm1027, %v1024, %v1026
        %vm1033 = vcmask 1047704
        %1034 = vst.msk [vmem:[#allocation2] sm:$0xff] %vm1033, %v1022
        %1035 = vst [vmem:[#allocation2 + $0x8] sm:$0xff] %v1028
        %vm1036 = vcmask 400384
        %1037 = vst.msk [vmem:[#allocation2 + $0x10] sm:$0xff] %vm1036, %v1029
        %v1038 = vld [vmem:[#allocation2] sm:$0xff]
        %v1039 = vld [vmem:[#allocation2 + $0x8] sm:$0xff]
        %v1040 = vld [vmem:[#allocation2 + $0x10] sm:$0xff]
        %1041 = vst [vmem:[#allocation3] sm:$0xff] %v1038
        %1042 = vst [vmem:[#allocation3 + $0x8] sm:$0xff] %v1039
        %1043 = vst.msk [vmem:[#allocation3 + $0x10] sm:$0xff] %vm442, %v1040
        %v1044 = vld [vmem:[#allocation2] sm:$0xff]
        %v1045 = vld [vmem:[#allocation2 + $0x8] sm:$0xff]
        %v1046 = vld [vmem:[#allocation2 + $0x10] sm:$0xff]
        %1050 = vrot.lane.b32.xlu0 %v1044, 127
        %v1051 = vpop.permute.xlu0 %1050
        %1052 = vrot.lane.b32.xlu0 %v1045, 127
        %v1053 = vpop.permute.xlu0 %1052
        %1054 = vrot.lane.b32.xlu0 %v1046, 127
        %v1055 = vpop.permute.xlu0 %1054
        %v1056 = vsel %vm482, %v1051, %v1053
        %v1057 = vsel %vm482, %v1053, %v1055
        %1061 = vst [vmem:[#allocation3 + $0x18] sm:$0xff] %v1056
        %1062 = vst [vmem:[#allocation3 + $0x20] sm:$0xff] %v1057
        %1063 = vst.msk [vmem:[#allocation3 + $0x28] sm:$0xff] %vm442, %v1055
        %v1064 = vld [vmem:[#allocation2] sm:$0xff]
        %v1065 = vld [vmem:[#allocation2 + $0x8] sm:$0xff]
        %v1066 = vld [vmem:[#allocation2 + $0x10] sm:$0xff]
        %1070 = vrot.lane.b32.xlu0 %v1064, 126
        %v1071 = vpop.permute.xlu0 %1070
        %1072 = vrot.lane.b32.xlu0 %v1065, 126
        %v1073 = vpop.permute.xlu0 %1072
        %1074 = vrot.lane.b32.xlu0 %v1066, 126
        %v1075 = vpop.permute.xlu0 %1074
        %v1076 = vsel %vm524, %v1071, %v1073
        %v1077 = vsel %vm524, %v1073, %v1075
        %1081 = vst [vmem:[#allocation3 + $0x30] sm:$0xff] %v1076
        %1082 = vst [vmem:[#allocation3 + $0x38] sm:$0xff] %v1077
        %1083 = vst.msk [vmem:[#allocation3 + $0x40] sm:$0xff] %vm442, %v1075
        %v1084 = vld [vmem:[#allocation2] sm:$0xff]
        %v1085 = vld [vmem:[#allocation2 + $0x8] sm:$0xff]
        %v1086 = vld [vmem:[#allocation2 + $0x10] sm:$0xff]
        %1090 = vrot.lane.b32.xlu0 %v1084, 110
        %v1091 = vpop.permute.xlu0 %1090
        %1092 = vrot.lane.b32.xlu0 %v1085, 110
        %v1093 = vpop.permute.xlu0 %1092
        %1094 = vrot.lane.b32.xlu0 %v1086, 110
        %v1095 = vpop.permute.xlu0 %1094
        %v1096 = vsel %vm574, %v1091, %v1093
        %v1097 = vsel %vm574, %v1093, %v1095
        %1101 = vst [vmem:[#allocation3 + $0x48] sm:$0xff] %v1096
        %1102 = vst [vmem:[#allocation3 + $0x50] sm:$0xff] %v1097
        %1103 = vst.msk [vmem:[#allocation3 + $0x58] sm:$0xff] %vm442, %v1095
        %v1104 = vld [vmem:[#allocation2] sm:$0xff]
        %v1105 = vld [vmem:[#allocation2 + $0x8] sm:$0xff]
        %v1106 = vld [vmem:[#allocation2 + $0x10] sm:$0xff]
        %1110 = vrot.lane.b32.xlu0 %v1104, 109
        %v1111 = vpop.permute.xlu0 %1110
        %1112 = vrot.lane.b32.xlu0 %v1105, 109
        %v1113 = vpop.permute.xlu0 %1112
        %1114 = vrot.lane.b32.xlu0 %v1106, 109
        %v1115 = vpop.permute.xlu0 %1114
        %v1116 = vsel %vm615, %v1111, %v1113
        %v1117 = vsel %vm615, %v1113, %v1115
        %1121 = vst [vmem:[#allocation3 + $0x60] sm:$0xff] %v1116
        %1122 = vst [vmem:[#allocation3 + $0x68] sm:$0xff] %v1117
        %1123 = vst.msk [vmem:[#allocation3 + $0x70] sm:$0xff] %vm442, %v1115
        %v1124 = vld [vmem:[#allocation2] sm:$0xff]
        %v1125 = vld [vmem:[#allocation2 + $0x8] sm:$0xff]
        %v1126 = vld [vmem:[#allocation2 + $0x10] sm:$0xff]
        %1130 = vrot.lane.b32.xlu0 %v1124, 108
        %v1131 = vpop.permute.xlu0 %1130
        %1132 = vrot.lane.b32.xlu0 %v1125, 108
        %v1133 = vpop.permute.xlu0 %1132
        %1134 = vrot.lane.b32.xlu0 %v1126, 108
        %v1135 = vpop.permute.xlu0 %1134
        %v1136 = vsel %vm665, %v1131, %v1133
        %v1137 = vsel %vm665, %v1133, %v1135
        %1141 = vst [vmem:[#allocation3 + $0x78] sm:$0xff] %v1136
        %1142 = vst [vmem:[#allocation3 + $0x80] sm:$0xff] %v1137
        %1143 = vst.msk [vmem:[#allocation3 + $0x88] sm:$0xff] %vm442, %v1135
        %v1144 = vld [vmem:[#allocation2] sm:$0xff]
        %v1145 = vld [vmem:[#allocation2 + $0x8] sm:$0xff]
        %v1146 = vld [vmem:[#allocation2 + $0x10] sm:$0xff]
        %1150 = vrot.lane.b32.xlu0 %v1144, 92
        %v1151 = vpop.permute.xlu0 %1150
        %1152 = vrot.lane.b32.xlu0 %v1145, 92
        %v1153 = vpop.permute.xlu0 %1152
        %1154 = vrot.lane.b32.xlu0 %v1146, 92
        %v1155 = vpop.permute.xlu0 %1154
        %v1156 = vsel %vm706, %v1151, %v1153
        %v1157 = vsel %vm706, %v1153, %v1155
        %1161 = vst [vmem:[#allocation3 + $0x90] sm:$0xff] %v1156
        %1162 = vst [vmem:[#allocation3 + $0x98] sm:$0xff] %v1157
        %1163 = vst.msk [vmem:[#allocation3 + $0xa0] sm:$0xff] %vm442, %v1155
        %v1164 = vld [vmem:[#allocation2] sm:$0xff]
        %v1165 = vld [vmem:[#allocation2 + $0x8] sm:$0xff]
        %v1166 = vld [vmem:[#allocation2 + $0x10] sm:$0xff]
        %1170 = vrot.lane.b32.xlu0 %v1164, 91
        %v1171 = vpop.permute.xlu0 %1170
        %1172 = vrot.lane.b32.xlu0 %v1165, 91
        %v1173 = vpop.permute.xlu0 %1172
        %1174 = vrot.lane.b32.xlu0 %v1166, 91
        %v1175 = vpop.permute.xlu0 %1174
        %v1176 = vsel %vm756, %v1171, %v1173
        %v1177 = vsel %vm756, %v1173, %v1175
        %1181 = vst [vmem:[#allocation3 + $0xa8] sm:$0xff] %v1176
        %1182 = vst [vmem:[#allocation3 + $0xb0] sm:$0xff] %v1177
        %1183 = vst.msk [vmem:[#allocation3 + $0xb8] sm:$0xff] %vm442, %v1175
        %v1184 = vld [vmem:[#allocation2] sm:$0xff]
        %v1185 = vld [vmem:[#allocation2 + $0x8] sm:$0xff]
        %v1186 = vld [vmem:[#allocation2 + $0x10] sm:$0xff]
        %1190 = vrot.lane.b32.xlu0 %v1184, 90
        %v1191 = vpop.permute.xlu0 %1190
        %1192 = vrot.lane.b32.xlu0 %v1185, 90
        %v1193 = vpop.permute.xlu0 %1192
        %1194 = vrot.lane.b32.xlu0 %v1186, 90
        %v1195 = vpop.permute.xlu0 %1194
        %v1196 = vsel %vm797, %v1191, %v1193
        %v1197 = vsel %vm797, %v1193, %v1195
        %1201 = vst [vmem:[#allocation3 + $0xc0] sm:$0xff] %v1196
        %1202 = vst [vmem:[#allocation3 + $0xc8] sm:$0xff] %v1197
        %1203 = vst.msk [vmem:[#allocation3 + $0xd0] sm:$0xff] %vm442, %v1195
        %v1204 = vld [vmem:[#allocation12] sm:$0xff]
        %v1205 = vld [vmem:[#allocation3] sm:$0xff]
        %v1206 = vld [vmem:[#allocation3 + $0x8] sm:$0xff]
        %v1207 = vld [vmem:[#allocation3 + $0x10] sm:$0xff]
        %v1208 = vld [vmem:[#allocation3 + $0x18] sm:$0xff]
        %v1209 = vld [vmem:[#allocation3 + $0x20] sm:$0xff]
        %v1210 = vld [vmem:[#allocation3 + $0x28] sm:$0xff]
        %v1211 = vld [vmem:[#allocation3 + $0x30] sm:$0xff]
        %v1212 = vld [vmem:[#allocation3 + $0x38] sm:$0xff]
        %v1213 = vld [vmem:[#allocation3 + $0x40] sm:$0xff]
        %v1214 = vld [vmem:[#allocation3 + $0x48] sm:$0xff]
        %v1215 = vld [vmem:[#allocation3 + $0x50] sm:$0xff]
        %v1216 = vld [vmem:[#allocation3 + $0x58] sm:$0xff]
        %v1217 = vld [vmem:[#allocation3 + $0x60] sm:$0xff]
        %v1218 = vld [vmem:[#allocation3 + $0x68] sm:$0xff]
        %v1219 = vld [vmem:[#allocation3 + $0x70] sm:$0xff]
        %v1220 = vld [vmem:[#allocation3 + $0x78] sm:$0xff]
        %v1221 = vld [vmem:[#allocation3 + $0x80] sm:$0xff]
        %v1222 = vld [vmem:[#allocation3 + $0x88] sm:$0xff]
        %v1223 = vld [vmem:[#allocation3 + $0x90] sm:$0xff]
        %v1224 = vld [vmem:[#allocation3 + $0x98] sm:$0xff]
        %v1225 = vld [vmem:[#allocation3 + $0xa0] sm:$0xff]
        %v1226 = vld [vmem:[#allocation3 + $0xa8] sm:$0xff]
        %v1227 = vld [vmem:[#allocation3 + $0xb0] sm:$0xff]
        %v1228 = vld [vmem:[#allocation3 + $0xb8] sm:$0xff]
        %v1229 = vld [vmem:[#allocation3 + $0xc0] sm:$0xff]
        %v1230 = vld [vmem:[#allocation3 + $0xc8] sm:$0xff]
        %v1231 = vld [vmem:[#allocation3 + $0xd0] sm:$0xff]
        %vm1232 = vcmask 588800
        %v1234 = vsel %vm1232, %v1204, 0
        %1236 = vmatprep.subr.mxu0 %v1206
        %1237 = vmatpush1.msra.mxu0 %v1205
        %1238 = vmatprep.subr.mxu0 %v1209
        %1239 = vmatpush1.msra.mxu0 %v1208
        %1240 = vmatprep.subr.mxu0 %v1212
        %1241 = vmatpush1.msra.mxu0 %v1211
        %1242 = vmatprep.subr.mxu0 %v1215
        %1243 = vmatpush1.msra.mxu0 %v1214
        %1244 = vmatprep.subr.mxu0 %v1218
        %1245 = vmatpush1.msra.mxu0 %v1217
        %1246 = vmatprep.subr.mxu0 %v1221
        %1247 = vmatpush1.msra.mxu0 %v1220
        %1248 = vmatprep.subr.mxu0 %v1224
        %1249 = vmatpush1.msra.mxu0 %v1223
        %1250 = vmatprep.subr.mxu0 %v1227
        %1251 = vmatpush1.msra.mxu0 %v1226
        %1252 = vmatprep.subr.mxu0 %v1230
        %1253 = vmatpush1.msra.mxu0 %v1229
        %1254 = vmatprep.subr.mxu0 0.0
        %1255 = vmatpush1.msra.mxu0 0.0
        %1256 = vmatprep.subr.mxu0 0.0
        %1257 = vmatpush1.msra.mxu0 0.0
        %1258 = vmatprep.subr.mxu0 0.0
        %1259 = vmatpush1.msra.mxu0 0.0
        %1260 = vmatprep.subr.mxu0 0.0
        %1261 = vmatpush1.msra.mxu0 0.0
        %1262 = vmatprep.subr.mxu0 0.0
        %1263 = vmatpush1.msra.mxu0 0.0
        %1264 = vmatprep.subr.mxu0 0.0
        %1265 = vmatpush1.msra.mxu0 0.0
        %1266 = vmatprep.subr.mxu0 0.0
        %1267 = vmatpush1.msra.mxu0 0.0
        %1268 = vmatprep.subr.mxu0 0.0
        %1269 = vmatpush1.msra.mxu0 0.0
        %1270 = vmatprep.subr.mxu0 0.0
        %1271 = vmatpush1.msra.mxu0 0.0
        %1272 = vmatprep.subr.mxu0 0.0
        %1273 = vmatpush1.msra.mxu0 0.0
        %1274 = vmatprep.subr.mxu0 0.0
        %1275 = vmatpush1.msra.mxu0 0.0
        %1276 = vmatprep.subr.mxu0 0.0
        %1277 = vmatpush1.msra.mxu0 0.0
        %1278 = vmatprep.subr.mxu0 0.0
        %1279 = vmatpush1.msra.mxu0 0.0
        %1280 = vmatprep.subr.mxu0 0.0
        %1281 = vmatpush1.msra.mxu0 0.0
        %1282 = vmatprep.subr.mxu0 0.0
        %1283 = vmatpush1.msra.mxu0 0.0
        %1284 = vmatprep.subr.mxu0 0.0
        %1285 = vmatpush1.msra.mxu0 0.0
        %1286 = vmatprep.subr.mxu0 0.0
        %1287 = vmatpush1.msra.mxu0 0.0
        %1288 = vmatprep.subr.mxu0 0.0
        %1289 = vmatpush1.msra.mxu0 0.0
        %1290 = vmatprep.subr.mxu0 0.0
        %1291 = vmatpush1.msra.mxu0 0.0
        %1292 = vmatprep.subr.mxu0 0.0
        %1293 = vmatpush1.msra.mxu0 0.0
        %1294 = vmatprep.subr.mxu0 0.0
        %1295 = vmatpush1.msra.mxu0 0.0
        %1296 = vmatprep.subr.mxu0 0.0
        %1297 = vmatpush1.msra.mxu0 0.0
        %1298 = vmatprep.subr.mxu0 0.0
        %1299 = vmatpush1.msra.mxu0 0.0
        %1300 = vmatprep.mubr.f32.mxu0 0.0
        %1301 = vmatmul.mubr.f32.gmra.mrb[0].mxu0 %v1234
        %v1302 = vpop.f32.mrb[0].mxu0
        %v1303 = vadd.f32 0.0, %v1302
        %v1304 = vpop.f32.mrb[0].mxu0
        %v1305 = vadd.f32 0.0, %v1304
        %1306 = vdwg.mxu0
        %1307 = vmatprep.subr.mxu0 0.0
        %1308 = vmatpush1.msra.mxu0 %v1207
        %1309 = vmatprep.subr.mxu0 0.0
        %1310 = vmatpush1.msra.mxu0 %v1210
        %1311 = vmatprep.subr.mxu0 0.0
        %1312 = vmatpush1.msra.mxu0 %v1213
        %1313 = vmatprep.subr.mxu0 0.0
        %1314 = vmatpush1.msra.mxu0 %v1216
        %1315 = vmatprep.subr.mxu0 0.0
        %1316 = vmatpush1.msra.mxu0 %v1219
        %1317 = vmatprep.subr.mxu0 0.0
        %1318 = vmatpush1.msra.mxu0 %v1222
        %1319 = vmatprep.subr.mxu0 0.0
        %1320 = vmatpush1.msra.mxu0 %v1225
        %1321 = vmatprep.subr.mxu0 0.0
        %1322 = vmatpush1.msra.mxu0 %v1228
        %1323 = vmatprep.subr.mxu0 0.0
        %1324 = vmatpush1.msra.mxu0 %v1231
        %1325 = vmatprep.subr.mxu0 0.0
        %1326 = vmatpush1.msra.mxu0 0.0
        %1327 = vmatprep.subr.mxu0 0.0
        %1328 = vmatpush1.msra.mxu0 0.0
        %1329 = vmatprep.subr.mxu0 0.0
        %1330 = vmatpush1.msra.mxu0 0.0
        %1331 = vmatprep.subr.mxu0 0.0
        %1332 = vmatpush1.msra.mxu0 0.0
        %1333 = vmatprep.subr.mxu0 0.0
        %1334 = vmatpush1.msra.mxu0 0.0
        %1335 = vmatprep.subr.mxu0 0.0
        %1336 = vmatpush1.msra.mxu0 0.0
        %1337 = vmatprep.subr.mxu0 0.0
        %1338 = vmatpush1.msra.mxu0 0.0
        %1339 = vmatprep.subr.mxu0 0.0
        %1340 = vmatpush1.msra.mxu0 0.0
        %1341 = vmatprep.subr.mxu0 0.0
        %1342 = vmatpush1.msra.mxu0 0.0
        %1343 = vmatprep.subr.mxu0 0.0
        %1344 = vmatpush1.msra.mxu0 0.0
        %1345 = vmatprep.subr.mxu0 0.0
        %1346 = vmatpush1.msra.mxu0 0.0
        %1347 = vmatprep.subr.mxu0 0.0
        %1348 = vmatpush1.msra.mxu0 0.0
        %1349 = vmatprep.subr.mxu0 0.0
        %1350 = vmatpush1.msra.mxu0 0.0
        %1351 = vmatprep.subr.mxu0 0.0
        %1352 = vmatpush1.msra.mxu0 0.0
        %1353 = vmatprep.subr.mxu0 0.0
        %1354 = vmatpush1.msra.mxu0 0.0
        %1355 = vmatprep.subr.mxu0 0.0
        %1356 = vmatpush1.msra.mxu0 0.0
        %1357 = vmatprep.subr.mxu0 0.0
        %1358 = vmatpush1.msra.mxu0 0.0
        %1359 = vmatprep.subr.mxu0 0.0
        %1360 = vmatpush1.msra.mxu0 0.0
        %1361 = vmatprep.subr.mxu0 0.0
        %1362 = vmatpush1.msra.mxu0 0.0
        %1363 = vmatprep.subr.mxu0 0.0
        %1364 = vmatpush1.msra.mxu0 0.0
        %1365 = vmatprep.subr.mxu0 0.0
        %1366 = vmatpush1.msra.mxu0 0.0
        %1367 = vmatprep.subr.mxu0 0.0
        %1368 = vmatpush1.msra.mxu0 0.0
        %1369 = vmatprep.subr.mxu0 0.0
        %1370 = vmatpush1.msra.mxu0 0.0
        %1371 = vmatprep.mubr.f32.mxu0 0.0
        %1372 = vmatmul.mubr.f32.gmra.mrb[0].mxu0 %v1234
        %v1373 = vpop.f32.mrb[0].mxu0
        %v1374 = vadd.f32 0.0, %v1373
        %v1375 = vpop.f32.mrb[0].mxu0
        %1376 = vdwg.mxu0
        %v1377 = vmax.f32 %v1303, 0.0
        %v1378 = vmax.f32 %v1305, 0.0
        %v1379 = vmax.f32 %v1374, 0.0
        %v1380 = vmul.f32 %v1377, %v414
        %v1381 = vmul.f32 %v1378, %v415
        %v1382 = vmul.f32 %v1379, %v416
        %1386 = vrot.lane.b32.xlu0 %v1380, 19
        %v1387 = vpop.permute.xlu0 %1386
        %1388 = vrot.lane.b32.xlu0 %v1381, 19
        %v1389 = vpop.permute.xlu0 %1388
        %1390 = vrot.lane.b32.xlu0 %v1382, 19
        %v1391 = vpop.permute.xlu0 %1390
        %v1392 = vsel %vm1027, %v1387, %v1389
        %v1393 = vsel %vm1027, %v1389, %v1391
        %1397 = vst.msk [vmem:[#allocation2] sm:$0xff] %vm1033, %v1387
        %1398 = vst [vmem:[#allocation2 + $0x8] sm:$0xff] %v1392
        %1399 = vst.msk [vmem:[#allocation2 + $0x10] sm:$0xff] %vm1036, %v1393
        %v1400 = vld [vmem:[#allocation2] sm:$0xff]
        %v1401 = vld [vmem:[#allocation2 + $0x8] sm:$0xff]
        %v1402 = vld [vmem:[#allocation2 + $0x10] sm:$0xff]
        %1403 = vst [vmem:[#allocation3] sm:$0xff] %v1400
        %1404 = vst [vmem:[#allocation3 + $0x8] sm:$0xff] %v1401
        %1405 = vst.msk [vmem:[#allocation3 + $0x10] sm:$0xff] %vm442, %v1402
        %v1406 = vld [vmem:[#allocation2] sm:$0xff]
        %v1407 = vld [vmem:[#allocation2 + $0x8] sm:$0xff]
        %v1408 = vld [vmem:[#allocation2 + $0x10] sm:$0xff]
        %1412 = vrot.lane.b32.xlu0 %v1406, 127
        %v1413 = vpop.permute.xlu0 %1412
        %1414 = vrot.lane.b32.xlu0 %v1407, 127
        %v1415 = vpop.permute.xlu0 %1414
        %1416 = vrot.lane.b32.xlu0 %v1408, 127
        %v1417 = vpop.permute.xlu0 %1416
        %v1418 = vsel %vm482, %v1413, %v1415
        %v1419 = vsel %vm482, %v1415, %v1417
        %1423 = vst [vmem:[#allocation3 + $0x18] sm:$0xff] %v1418
        %1424 = vst [vmem:[#allocation3 + $0x20] sm:$0xff] %v1419
        %1425 = vst.msk [vmem:[#allocation3 + $0x28] sm:$0xff] %vm442, %v1417
        %v1426 = vld [vmem:[#allocation2] sm:$0xff]
        %v1427 = vld [vmem:[#allocation2 + $0x8] sm:$0xff]
        %v1428 = vld [vmem:[#allocation2 + $0x10] sm:$0xff]
        %1432 = vrot.lane.b32.xlu0 %v1426, 126
        %v1433 = vpop.permute.xlu0 %1432
        %1434 = vrot.lane.b32.xlu0 %v1427, 126
        %v1435 = vpop.permute.xlu0 %1434
        %1436 = vrot.lane.b32.xlu0 %v1428, 126
        %v1437 = vpop.permute.xlu0 %1436
        %v1438 = vsel %vm524, %v1433, %v1435
        %v1439 = vsel %vm524, %v1435, %v1437
        %1443 = vst [vmem:[#allocation3 + $0x30] sm:$0xff] %v1438
        %1444 = vst [vmem:[#allocation3 + $0x38] sm:$0xff] %v1439
        %1445 = vst.msk [vmem:[#allocation3 + $0x40] sm:$0xff] %vm442, %v1437
        %v1446 = vld [vmem:[#allocation2] sm:$0xff]
        %v1447 = vld [vmem:[#allocation2 + $0x8] sm:$0xff]
        %v1448 = vld [vmem:[#allocation2 + $0x10] sm:$0xff]
        %1452 = vrot.lane.b32.xlu0 %v1446, 110
        %v1453 = vpop.permute.xlu0 %1452
        %1454 = vrot.lane.b32.xlu0 %v1447, 110
        %v1455 = vpop.permute.xlu0 %1454
        %1456 = vrot.lane.b32.xlu0 %v1448, 110
        %v1457 = vpop.permute.xlu0 %1456
        %v1458 = vsel %vm574, %v1453, %v1455
        %v1459 = vsel %vm574, %v1455, %v1457
        %1463 = vst [vmem:[#allocation3 + $0x48] sm:$0xff] %v1458
        %1464 = vst [vmem:[#allocation3 + $0x50] sm:$0xff] %v1459
        %1465 = vst.msk [vmem:[#allocation3 + $0x58] sm:$0xff] %vm442, %v1457
        %v1466 = vld [vmem:[#allocation2] sm:$0xff]
        %v1467 = vld [vmem:[#allocation2 + $0x8] sm:$0xff]
        %v1468 = vld [vmem:[#allocation2 + $0x10] sm:$0xff]
        %1472 = vrot.lane.b32.xlu0 %v1466, 109
        %v1473 = vpop.permute.xlu0 %1472
        %1474 = vrot.lane.b32.xlu0 %v1467, 109
        %v1475 = vpop.permute.xlu0 %1474
        %1476 = vrot.lane.b32.xlu0 %v1468, 109
        %v1477 = vpop.permute.xlu0 %1476
        %v1478 = vsel %vm615, %v1473, %v1475
        %v1479 = vsel %vm615, %v1475, %v1477
        %1483 = vst [vmem:[#allocation3 + $0x60] sm:$0xff] %v1478
        %1484 = vst [vmem:[#allocation3 + $0x68] sm:$0xff] %v1479
        %1485 = vst.msk [vmem:[#allocation3 + $0x70] sm:$0xff] %vm442, %v1477
        %v1486 = vld [vmem:[#allocation2] sm:$0xff]
        %v1487 = vld [vmem:[#allocation2 + $0x8] sm:$0xff]
        %v1488 = vld [vmem:[#allocation2 + $0x10] sm:$0xff]
        %1492 = vrot.lane.b32.xlu0 %v1486, 108
        %v1493 = vpop.permute.xlu0 %1492
        %1494 = vrot.lane.b32.xlu0 %v1487, 108
        %v1495 = vpop.permute.xlu0 %1494
        %1496 = vrot.lane.b32.xlu0 %v1488, 108
        %v1497 = vpop.permute.xlu0 %1496
        %v1498 = vsel %vm665, %v1493, %v1495
        %v1499 = vsel %vm665, %v1495, %v1497
        %1503 = vst [vmem:[#allocation3 + $0x78] sm:$0xff] %v1498
        %1504 = vst [vmem:[#allocation3 + $0x80] sm:$0xff] %v1499
        %1505 = vst.msk [vmem:[#allocation3 + $0x88] sm:$0xff] %vm442, %v1497
        %v1506 = vld [vmem:[#allocation2] sm:$0xff]
        %v1507 = vld [vmem:[#allocation2 + $0x8] sm:$0xff]
        %v1508 = vld [vmem:[#allocation2 + $0x10] sm:$0xff]
        %1512 = vrot.lane.b32.xlu0 %v1506, 92
        %v1513 = vpop.permute.xlu0 %1512
        %1514 = vrot.lane.b32.xlu0 %v1507, 92
        %v1515 = vpop.permute.xlu0 %1514
        %1516 = vrot.lane.b32.xlu0 %v1508, 92
        %v1517 = vpop.permute.xlu0 %1516
        %v1518 = vsel %vm706, %v1513, %v1515
        %v1519 = vsel %vm706, %v1515, %v1517
        %1523 = vst [vmem:[#allocation3 + $0x90] sm:$0xff] %v1518
        %1524 = vst [vmem:[#allocation3 + $0x98] sm:$0xff] %v1519
        %1525 = vst.msk [vmem:[#allocation3 + $0xa0] sm:$0xff] %vm442, %v1517
        %v1526 = vld [vmem:[#allocation2] sm:$0xff]
        %v1527 = vld [vmem:[#allocation2 + $0x8] sm:$0xff]
        %v1528 = vld [vmem:[#allocation2 + $0x10] sm:$0xff]
        %1532 = vrot.lane.b32.xlu0 %v1526, 91
        %v1533 = vpop.permute.xlu0 %1532
        %1534 = vrot.lane.b32.xlu0 %v1527, 91
        %v1535 = vpop.permute.xlu0 %1534
        %1536 = vrot.lane.b32.xlu0 %v1528, 91
        %v1537 = vpop.permute.xlu0 %1536
        %v1538 = vsel %vm756, %v1533, %v1535
        %v1539 = vsel %vm756, %v1535, %v1537
        %1543 = vst [vmem:[#allocation3 + $0xa8] sm:$0xff] %v1538
        %1544 = vst [vmem:[#allocation3 + $0xb0] sm:$0xff] %v1539
        %1545 = vst.msk [vmem:[#allocation3 + $0xb8] sm:$0xff] %vm442, %v1537
        %v1546 = vld [vmem:[#allocation2] sm:$0xff]
        %v1547 = vld [vmem:[#allocation2 + $0x8] sm:$0xff]
        %v1548 = vld [vmem:[#allocation2 + $0x10] sm:$0xff]
        %1552 = vrot.lane.b32.xlu0 %v1546, 90
        %v1553 = vpop.permute.xlu0 %1552
        %1554 = vrot.lane.b32.xlu0 %v1547, 90
        %v1555 = vpop.permute.xlu0 %1554
        %1556 = vrot.lane.b32.xlu0 %v1548, 90
        %v1557 = vpop.permute.xlu0 %1556
        %v1558 = vsel %vm797, %v1553, %v1555
        %v1559 = vsel %vm797, %v1555, %v1557
        %1563 = vst [vmem:[#allocation3 + $0xc0] sm:$0xff] %v1558
        %1564 = vst [vmem:[#allocation3 + $0xc8] sm:$0xff] %v1559
        %1565 = vst.msk [vmem:[#allocation3 + $0xd0] sm:$0xff] %vm442, %v1557
        %v1566 = vld [vmem:[#allocation13] sm:$0xff]
        %v1567 = vld [vmem:[#allocation3] sm:$0xff]
        %v1568 = vld [vmem:[#allocation3 + $0x8] sm:$0xff]
        %v1569 = vld [vmem:[#allocation3 + $0x10] sm:$0xff]
        %v1570 = vld [vmem:[#allocation3 + $0x18] sm:$0xff]
        %v1571 = vld [vmem:[#allocation3 + $0x20] sm:$0xff]
        %v1572 = vld [vmem:[#allocation3 + $0x28] sm:$0xff]
        %v1573 = vld [vmem:[#allocation3 + $0x30] sm:$0xff]
        %v1574 = vld [vmem:[#allocation3 + $0x38] sm:$0xff]
        %v1575 = vld [vmem:[#allocation3 + $0x40] sm:$0xff]
        %v1576 = vld [vmem:[#allocation3 + $0x48] sm:$0xff]
        %v1577 = vld [vmem:[#allocation3 + $0x50] sm:$0xff]
        %v1578 = vld [vmem:[#allocation3 + $0x58] sm:$0xff]
        %v1579 = vld [vmem:[#allocation3 + $0x60] sm:$0xff]
        %v1580 = vld [vmem:[#allocation3 + $0x68] sm:$0xff]
        %v1581 = vld [vmem:[#allocation3 + $0x70] sm:$0xff]
        %v1582 = vld [vmem:[#allocation3 + $0x78] sm:$0xff]
        %v1583 = vld [vmem:[#allocation3 + $0x80] sm:$0xff]
        %v1584 = vld [vmem:[#allocation3 + $0x88] sm:$0xff]
        %v1585 = vld [vmem:[#allocation3 + $0x90] sm:$0xff]
        %v1586 = vld [vmem:[#allocation3 + $0x98] sm:$0xff]
        %v1587 = vld [vmem:[#allocation3 + $0xa0] sm:$0xff]
        %v1588 = vld [vmem:[#allocation3 + $0xa8] sm:$0xff]
        %v1589 = vld [vmem:[#allocation3 + $0xb0] sm:$0xff]
        %v1590 = vld [vmem:[#allocation3 + $0xb8] sm:$0xff]
        %v1591 = vld [vmem:[#allocation3 + $0xc0] sm:$0xff]
        %v1592 = vld [vmem:[#allocation3 + $0xc8] sm:$0xff]
        %v1593 = vld [vmem:[#allocation3 + $0xd0] sm:$0xff]
        %v1595 = vsel %vm1232, %v1566, 0
        %1597 = vmatprep.subr.mxu0 %v1568
        %1598 = vmatpush1.msra.mxu0 %v1567
        %1599 = vmatprep.subr.mxu0 %v1571
        %1600 = vmatpush1.msra.mxu0 %v1570
        %1601 = vmatprep.subr.mxu0 %v1574
        %1602 = vmatpush1.msra.mxu0 %v1573
        %1603 = vmatprep.subr.mxu0 %v1577
        %1604 = vmatpush1.msra.mxu0 %v1576
        %1605 = vmatprep.subr.mxu0 %v1580
        %1606 = vmatpush1.msra.mxu0 %v1579
        %1607 = vmatprep.subr.mxu0 %v1583
        %1608 = vmatpush1.msra.mxu0 %v1582
        %1609 = vmatprep.subr.mxu0 %v1586
        %1610 = vmatpush1.msra.mxu0 %v1585
        %1611 = vmatprep.subr.mxu0 %v1589
        %1612 = vmatpush1.msra.mxu0 %v1588
        %1613 = vmatprep.subr.mxu0 %v1592
        %1614 = vmatpush1.msra.mxu0 %v1591
        %1615 = vmatprep.subr.mxu0 0.0
        %1616 = vmatpush1.msra.mxu0 0.0
        %1617 = vmatprep.subr.mxu0 0.0
        %1618 = vmatpush1.msra.mxu0 0.0
        %1619 = vmatprep.subr.mxu0 0.0
        %1620 = vmatpush1.msra.mxu0 0.0
        %1621 = vmatprep.subr.mxu0 0.0
        %1622 = vmatpush1.msra.mxu0 0.0
        %1623 = vmatprep.subr.mxu0 0.0
        %1624 = vmatpush1.msra.mxu0 0.0
        %1625 = vmatprep.subr.mxu0 0.0
        %1626 = vmatpush1.msra.mxu0 0.0
        %1627 = vmatprep.subr.mxu0 0.0
        %1628 = vmatpush1.msra.mxu0 0.0
        %1629 = vmatprep.subr.mxu0 0.0
        %1630 = vmatpush1.msra.mxu0 0.0
        %1631 = vmatprep.subr.mxu0 0.0
        %1632 = vmatpush1.msra.mxu0 0.0
        %1633 = vmatprep.subr.mxu0 0.0
        %1634 = vmatpush1.msra.mxu0 0.0
        %1635 = vmatprep.subr.mxu0 0.0
        %1636 = vmatpush1.msra.mxu0 0.0
        %1637 = vmatprep.subr.mxu0 0.0
        %1638 = vmatpush1.msra.mxu0 0.0
        %1639 = vmatprep.subr.mxu0 0.0
        %1640 = vmatpush1.msra.mxu0 0.0
        %1641 = vmatprep.subr.mxu0 0.0
        %1642 = vmatpush1.msra.mxu0 0.0
        %1643 = vmatprep.subr.mxu0 0.0
        %1644 = vmatpush1.msra.mxu0 0.0
        %1645 = vmatprep.subr.mxu0 0.0
        %1646 = vmatpush1.msra.mxu0 0.0
        %1647 = vmatprep.subr.mxu0 0.0
        %1648 = vmatpush1.msra.mxu0 0.0
        %1649 = vmatprep.subr.mxu0 0.0
        %1650 = vmatpush1.msra.mxu0 0.0
        %1651 = vmatprep.subr.mxu0 0.0
        %1652 = vmatpush1.msra.mxu0 0.0
        %1653 = vmatprep.subr.mxu0 0.0
        %1654 = vmatpush1.msra.mxu0 0.0
        %1655 = vmatprep.subr.mxu0 0.0
        %1656 = vmatpush1.msra.mxu0 0.0
        %1657 = vmatprep.subr.mxu0 0.0
        %1658 = vmatpush1.msra.mxu0 0.0
        %1659 = vmatprep.subr.mxu0 0.0
        %1660 = vmatpush1.msra.mxu0 0.0
        %1661 = vmatprep.mubr.f32.mxu0 0.0
        %1662 = vmatmul.mubr.f32.gmra.mrb[0].mxu0 %v1595
        %v1663 = vpop.f32.mrb[0].mxu0
        %v1664 = vadd.f32 0.0, %v1663
        %v1665 = vpop.f32.mrb[0].mxu0
        %v1666 = vadd.f32 0.0, %v1665
        %1667 = vdwg.mxu0
        %1668 = vmatprep.subr.mxu0 0.0
        %1669 = vmatpush1.msra.mxu0 %v1569
        %1670 = vmatprep.subr.mxu0 0.0
        %1671 = vmatpush1.msra.mxu0 %v1572
        %1672 = vmatprep.subr.mxu0 0.0
        %1673 = vmatpush1.msra.mxu0 %v1575
        %1674 = vmatprep.subr.mxu0 0.0
        %1675 = vmatpush1.msra.mxu0 %v1578
        %1676 = vmatprep.subr.mxu0 0.0
        %1677 = vmatpush1.msra.mxu0 %v1581
        %1678 = vmatprep.subr.mxu0 0.0
        %1679 = vmatpush1.msra.mxu0 %v1584
        %1680 = vmatprep.subr.mxu0 0.0
        %1681 = vmatpush1.msra.mxu0 %v1587
        %1682 = vmatprep.subr.mxu0 0.0
        %1683 = vmatpush1.msra.mxu0 %v1590
        %1684 = vmatprep.subr.mxu0 0.0
        %1685 = vmatpush1.msra.mxu0 %v1593
        %1686 = vmatprep.subr.mxu0 0.0
        %1687 = vmatpush1.msra.mxu0 0.0
        %1688 = vmatprep.subr.mxu0 0.0
        %1689 = vmatpush1.msra.mxu0 0.0
        %1690 = vmatprep.subr.mxu0 0.0
        %1691 = vmatpush1.msra.mxu0 0.0
        %1692 = vmatprep.subr.mxu0 0.0
        %1693 = vmatpush1.msra.mxu0 0.0
        %1694 = vmatprep.subr.mxu0 0.0
        %1695 = vmatpush1.msra.mxu0 0.0
        %1696 = vmatprep.subr.mxu0 0.0
        %1697 = vmatpush1.msra.mxu0 0.0
        %1698 = vmatprep.subr.mxu0 0.0
        %1699 = vmatpush1.msra.mxu0 0.0
        %1700 = vmatprep.subr.mxu0 0.0
        %1701 = vmatpush1.msra.mxu0 0.0
        %1702 = vmatprep.subr.mxu0 0.0
        %1703 = vmatpush1.msra.mxu0 0.0
        %1704 = vmatprep.subr.mxu0 0.0
        %1705 = vmatpush1.msra.mxu0 0.0
        %1706 = vmatprep.subr.mxu0 0.0
        %1707 = vmatpush1.msra.mxu0 0.0
        %1708 = vmatprep.subr.mxu0 0.0
        %1709 = vmatpush1.msra.mxu0 0.0
        %1710 = vmatprep.subr.mxu0 0.0
        %1711 = vmatpush1.msra.mxu0 0.0
        %1712 = vmatprep.subr.mxu0 0.0
        %1713 = vmatpush1.msra.mxu0 0.0
        %1714 = vmatprep.subr.mxu0 0.0
        %1715 = vmatpush1.msra.mxu0 0.0
        %1716 = vmatprep.subr.mxu0 0.0
        %1717 = vmatpush1.msra.mxu0 0.0
        %1718 = vmatprep.subr.mxu0 0.0
        %1719 = vmatpush1.msra.mxu0 0.0
        %1720 = vmatprep.subr.mxu0 0.0
        %1721 = vmatpush1.msra.mxu0 0.0
        %1722 = vmatprep.subr.mxu0 0.0
        %1723 = vmatpush1.msra.mxu0 0.0
        %1724 = vmatprep.subr.mxu0 0.0
        %1725 = vmatpush1.msra.mxu0 0.0
        %1726 = vmatprep.subr.mxu0 0.0
        %1727 = vmatpush1.msra.mxu0 0.0
        %1728 = vmatprep.subr.mxu0 0.0
        %1729 = vmatpush1.msra.mxu0 0.0
        %1730 = vmatprep.subr.mxu0 0.0
        %1731 = vmatpush1.msra.mxu0 0.0
        %1732 = vmatprep.mubr.f32.mxu0 0.0
        %1733 = vmatmul.mubr.f32.gmra.mrb[0].mxu0 %v1595
        %v1734 = vpop.f32.mrb[0].mxu0
        %v1735 = vadd.f32 0.0, %v1734
        %v1736 = vpop.f32.mrb[0].mxu0
        %1737 = vdwg.mxu0
        %v1738 = vmax.f32 %v1664, 0.0
        %v1739 = vmax.f32 %v1666, 0.0
        %v1740 = vmax.f32 %v1735, 0.0
        %1741 = vst [vmem:[%s355] sm:$0xff] %v1738
        %1742 = vst [vmem:[%s355 + $0x8] sm:$0xff] %v1739
        %1743 = vst.msk [vmem:[%s355 + $0x10] sm:$0xff] %vm442, %v1740
        %vm1744 = vcmask 261360
        %1745 = vst.msk [vmem:[%s355 + $0x10] sm:$0xff] %vm1744, 0.0
        %s1746 = sand.u32 %s172, 1
        %s1747 = scalar_lea.sflag [#allocation6], %s1746
        %s1748 = sand.u32 %s172, 1
        %s1749 = smul.addr %s1748, 24
        %s1750 = scalar_lea.vmem [#allocation15], %s1749
        // Predicated region
        $region69: #{decoder_forward.1} parent=43 // pred_check
          %p1751 = pneg %p182
        $region70: #{decoder_forward.1} parent=43 // pred_check_branch
          %1753 = sbr.rel (%p1751) target = $region72
        $region71: #{decoder_forward.1} parent=43 // pred_region
          %s1755 = ssub.s32 384, 384
          %1756 = vsyncadd %s1747, %s1755
          %s1757 = smul.addr %s28, 3
          %s1758 = smul.addr %s1757, 128
          %s1759 = scalar_lea.hbm %s6, %s1758
          %s1761 = sshll.u32 %s1750, 4
          %s1762 = int_to_ptr.vmem [resolvable:$true] %s1761
          %1764 = dma.vmem_to_hbm [thread:$0]  %s1762, 384, %s1759, %s1747
        $region72: #{decoder_forward.1} parent=43 // pred_fallthru
          _
      $region44: #{decoder_forward.1} parent=5 // pred_fallthru
        _
      %p1765 = scmp.le.s32.totalorder 2, %s23
      // Predicated region
      $region73: #{decoder_forward.1} parent=5 // pred_check
        %p1766 = pneg %p1765
      $region74: #{decoder_forward.1} parent=5 // pred_check_branch
        %1768 = sbr.rel (%p1766) target = $region76
      $region75: #{decoder_forward.1} parent=5 // pred_region
        %s1769 = ssub.s32 %s23, 2
        // Predicated region
        $region77: #{decoder_forward.1} parent=75 // pred_check
          %p1770 = pneg %p188
        $region78: #{decoder_forward.1} parent=75 // pred_check_branch
          %1772 = sbr.rel (%p1770) target = $region80
        $region79: #{decoder_forward.1} parent=75 // pred_region
          %s1773 = sand.u32 %s173, 1
          %s1774 = scalar_lea.sflag [#allocation6], %s1773
          %s1775 = sand.u32 %s173, 1
          %s1776 = smul.addr %s1775, 24
          %s1777 = scalar_lea.vmem [#allocation15], %s1776
          %1778 = dma.done %s1774, 384
        $region80: #{decoder_forward.1} parent=75 // pred_fallthru
          _
      $region76: #{decoder_forward.1} parent=5 // pred_fallthru
        _
    $region6: #{decoder_forward.1} parent=1 // loop_footer
      %s27 = sadd.s32 1, %s23
    $region7: #{decoder_forward.1} parent=1 // loop_footer_branch
      %22 = sbr.rel target = $region3
    $region8: #{decoder_forward.1} parent=1 // loop_exit
      _
    %1779 = vsyncpa [#allocation5], 1
    %s1780 = scalar_lea.sflag [#allocation5], 1
    %1781 = vsyncpa %s1780, 1
    %1782 = vsyncpa [#allocation8], 1
    %s1783 = scalar_lea.sflag [#allocation8], 1
    %1784 = vsyncpa %s1783, 1
    %1785 = vsyncpa [#allocation11], 1
    %1786 = vsyncpa [#allocation14], 1
    %1787 = vsyncpa [#allocation6], 1
    %s1788 = scalar_lea.sflag [#allocation6], 1
    %1789 = vsyncpa %s1788, 1

</llo_original>
